<compile_context>
chip_gen: v7x
topology: tpu7x:2x2x1
jax: 0.10.0
libtpu: 0.0.40
codegen_flags: <defaults>
</compile_context>

<pallas_src>
import functools

import jax
import jax.numpy as jnp
from jax.experimental import pallas as pl
from jax.experimental.pallas import tpu as pltpu

_KSIZE = 4
_STRIDE = 2
_PAD = 2


def _conv_out(n):
    # Output spatial size of a k=4 / stride=2 / pad=2 conv.
    return (n + 2 * _PAD - _KSIZE) // _STRIDE + 1


# --------------------------------------------------------------------------
# Fused Pallas kernel: one image per grid step.
# --------------------------------------------------------------------------
def _fused_poly_kernel(H1, W1, H2, W2, We, Wo, kch, och,
                       p_ref, wcat_ref, wtap_ref, b_ref, o_ref, s_ref):
    """Fused U1/U2/U3 GEMM + polynomial combine + final conv C (+bias).

    p_ref    : (1, H1*W1, d*16) bf16 stage-1 patches; within each h1-row the
               w-positions are ordered [even w1 | odd w1].
    wcat_ref : (d*16, 3*kch) bf16 -- [W_U1 | W_U2 | W_U3] as a GEMM matrix.
    wtap_ref : (4, 4, och, kch) f32 -- layer_C weight, tap-major.
    b_ref    : (och,) f32 in SMEM -- layer_C bias.
    o_ref    : (1, och, H2, W2) f32 -- output block, already NCHW.
    s_ref    : (2, 2, H2+1, W2+1, kch) f32 VMEM scratch: row/col parity planes
               of the zero-padded in_C (pad=2 handled by the zero init).
    """
    # ---- stage 1: one GEMM against the concatenated weights + poly combine
    big = jnp.dot(p_ref[0], wcat_ref[...], preferred_element_type=jnp.float32)
    u1 = big[:, 0:kch]                       # out_U1
    u2 = big[:, kch:2 * kch]                 # out_U2
    u3 = big[:, 2 * kch:3 * kch]             # out_U3
    in_u3 = u1 + u1 * u2                     # out_U1 + out_U1 * out_U2
    in_c = u3 * in_u3 + in_u3                # (H1*W1, kch), never leaves VMEM

    # ---- scatter in_C into zero-padded parity planes (polyphase layout)
    zeros_plane = jnp.zeros((H2 + 1, W2 + 1, kch), jnp.float32)
    for pr in range(2):
        for pc in range(2):
            s_ref[pr, pc] = zeros_plane

    for h1 in range(H1):                     # static loop; see TODO(synk) above
        pr = h1 & 1
        prow = h1 // 2 + 1
        base = h1 * W1
        s_ref[pr, 0, prow, 1:1 + We, :] = in_c[base:base + We, :]          # even w1
        s_ref[pr, 1, prow, 1:1 + Wo, :] = in_c[base + We:base + W1, :]     # odd w1

    # ---- stage 2: 16 taps are contiguous static slices of the parity planes
    # tap (a,b) reads in_C_padded[2*i2+a, 2*j2+b, :] == plane[a&1, b&1][a//2+i2, b//2+j2, :]
    tacc = [jnp.zeros((H2, W2, kch), jnp.float32) for _ in range(och)]
    for a in range(_KSIZE):
        for b in range(_KSIZE):
            xs = s_ref[a & 1, b & 1, a // 2:a // 2 + H2, b // 2:b // 2 + W2, :]
            for oc in range(och):
                tacc[oc] = tacc[oc] + xs * wtap_ref[a, b, oc]

    for oc in range(och):
        res = jnp.sum(tacc[oc], axis=-1) + b_ref[oc]      # contract kch (lanes)
        o_ref[0, oc, :, :] = res.astype(o_ref.dtype)


# --------------------------------------------------------------------------
# Plain-JAX glue: stage-1 im2col (stride=2, pad=2, k=4), parity-grouped cols.
# --------------------------------------------------------------------------
def _extract_patches_grouped(z_bf16):
    """Returns (N, H1*W1, C*16) bf16 patches where, within each h1-row, the
    w-positions are ordered [even | odd]. Column order of the feature dim is
    (C slowest, kh, kw fastest), matching torch weight.reshape(O, C*kh*kw)."""
    patches = jax.lax.conv_general_dilated_patches(
        z_bf16,
        filter_shape=(_KSIZE, _KSIZE),
        window_strides=(_STRIDE, _STRIDE),
        padding=((_PAD, _PAD), (_PAD, _PAD)),
        dimension_numbers=("NCHW", "OIHW", "NHWC"),
    )
    n, h1, w1, kd = patches.shape
    grouped = jnp.concatenate(
        [patches[:, :, 0::2, :], patches[:, :, 1::2, :]], axis=2)
    return grouped.reshape(n, h1 * w1, kd), h1, w1


# --------------------------------------------------------------------------
# Full forward (NCHW in / NCHW out, same as the PyTorch module)
# --------------------------------------------------------------------------
@jax.jit
def poly_generator_c3(z, wu1, wu2, wu3, wc, bc):
    n = z.shape[0]
    kch = wu1.shape[0]
    och = wc.shape[0]

    # stage-1 im2col on bf16 z (one-hot filter -> exact copy into bf16 patches)
    p1, h1, w1 = _extract_patches_grouped(z.astype(jnp.bfloat16))
    kd = p1.shape[2]
    h2, w2 = _conv_out(h1), _conv_out(w1)
    we, wo = (w1 + 1) // 2, w1 // 2

    # [W_U1 | W_U2 | W_U3] as one bf16 GEMM matrix (I*kh*kw, 3*kch)
    wcat = jnp.concatenate(
        [wu1.reshape(kch, -1).T, wu2.reshape(kch, -1).T, wu3.reshape(kch, -1).T],
        axis=1).astype(jnp.bfloat16)
    # layer_C weight, tap-major: (kh, kw, och, kch)
    wtap = jnp.transpose(wc, (2, 3, 0, 1)).astype(jnp.float32)

    kernel = functools.partial(
        _fused_poly_kernel, h1, w1, h2, w2, we, wo, kch, och)

    out = pl.pallas_call(
        kernel,
        out_shape=jax.ShapeDtypeStruct((n, och, h2, w2), jnp.float32),
        grid=(n,),
        in_specs=[
            pl.BlockSpec((1, h1 * w1, kd), lambda i: (i, 0, 0)),
            # grid-invariant weights / bias ride as whole-array refs
            pl.BlockSpec(memory_space=pltpu.MemorySpace.VMEM),   # wcat
            pl.BlockSpec(memory_space=pltpu.MemorySpace.VMEM),   # wtap
            pl.BlockSpec(memory_space=pltpu.MemorySpace.SMEM),   # bias scalars
        ],
        out_specs=pl.BlockSpec((1, och, h2, w2), lambda i: (i, 0, 0, 0)),
        scratch_shapes=[
            pltpu.VMEM((2, 2, h2 + 1, w2 + 1, kch), jnp.float32),
        ],
        compiler_params=pltpu.CompilerParams(
            dimension_semantics=("parallel",)),
    )(p1, wcat, wtap, bc.astype(jnp.float32))
    return out                                       # already NCHW


# --------------------------------------------------------------------------
# Pure-JAX reference (lax conv) for correctness
# --------------------------------------------------------------------------
def _ref_forward(z, wu1, wu2, wu3, wc, bc):
    conv = functools.partial(
        jax.lax.conv_general_dilated,
        window_strides=(2, 2),
        padding=((2, 2), (2, 2)),
        dimension_numbers=("NCHW", "OIHW", "NCHW"),
        precision=jax.lax.Precision.HIGHEST,
    )
    u1 = conv(z, wu1)
    u2 = conv(z, wu2)
    u3 = conv(z, wu3)
    in_u3 = u1 + u1 * u2
    in_c = u3 * in_u3 + in_u3
    return conv(in_c, wc) + bc[None, :, None, None]


if __name__ == "__main__":
    # Small shapes consistent with the module: d=4 in-channels, k=8 hidden
    # channels, o=3 out-channels, batch=2, spatial 16x16.
    d, k, o = 4, 8, 3
    N, H, W = 2, 16, 16

    key = jax.random.PRNGKey(0)
    kz, k1, k2, k3, k4, k5 = jax.random.split(key, 6)
    z = jax.random.normal(kz, (N, d, H, W), jnp.float32)
    wu1 = 0.05 * jax.random.normal(k1, (k, d, 4, 4), jnp.float32)
    wu2 = 0.05 * jax.random.normal(k2, (k, d, 4, 4), jnp.float32)
    wu3 = 0.05 * jax.random.normal(k3, (k, d, 4, 4), jnp.float32)
    wc = 0.05 * jax.random.normal(k4, (o, k, 4, 4), jnp.float32)
    bc = 0.05 * jax.random.normal(k5, (o,), jnp.float32)

    out = poly_generator_c3(z, wu1, wu2, wu3, wc, bc)
    out = jax.block_until_ready(out)

    ref = _ref_forward(z, wu1, wu2, wu3, wc, bc)
    assert out.shape == ref.shape, (out.shape, ref.shape)
    # bf16 operand streaming (f32 accumulation) -> loosened tolerance per review
    max_err = float(jnp.max(jnp.abs(out - ref)))
    assert jnp.allclose(out, ref, rtol=2e-2, atol=2e-2), max_err
    print("KERNEL_OK")
</pallas_src>

<mosaic_0001>
module attributes {stable_mosaic.version = 11 : i64} {
  func.func @_fused_poly_kernel(%arg0: i32, %arg1: memref<1x81x64xbf16, #tpu.memory_space<vmem>>, %arg2: memref<64x24xbf16, #tpu.memory_space<vmem>>, %arg3: memref<4x4x3x8xf32, #tpu.memory_space<vmem>>, %arg4: memref<3xf32, #tpu.memory_space<smem>>, %arg5: memref<1x3x5x5xf32, #tpu.memory_space<vmem>>, %arg6: memref<2x2x6x6x8xf32, #tpu.memory_space<vmem>>) attributes {dimension_semantics = [#tpu.dimension_semantics<parallel>], iteration_bounds = array<i64: 2>, scalar_prefetch = 0 : i64, scratch_operands = 1 : i64, tpu.core_type = #tpu.core_type<tc>, window_params = [{transform_indices = @transform_0, window_bounds = array<i64: 1, 81, 64>}, {pipeline_mode = #tpu.pipeline_mode<synchronous>, transform_indices = @transform_1, window_bounds = array<i64: 64, 24>}, {pipeline_mode = #tpu.pipeline_mode<synchronous>, transform_indices = @transform_2, window_bounds = array<i64: 4, 4, 3, 8>}, {transform_indices = @transform_3, window_bounds = array<i64: 3>}, {transform_indices = @transform_4, window_bounds = array<i64: 1, 3, 5, 5>}]} {
    %c0 = arith.constant 0 : index
    %c0_0 = arith.constant 0 : index
    %c0_1 = arith.constant 0 : index
    %0 = vector.load %arg1[%c0, %c0_0, %c0_1] : memref<1x81x64xbf16, #tpu.memory_space<vmem>>, vector<1x81x64xbf16>
    %1 = vector.shape_cast %0 : vector<1x81x64xbf16> to vector<81x64xbf16>
    %c0_2 = arith.constant 0 : index
    %c0_3 = arith.constant 0 : index
    %2 = vector.load %arg2[%c0_2, %c0_3] : memref<64x24xbf16, #tpu.memory_space<vmem>>, vector<64x24xbf16>
    %cst = arith.constant dense<0.000000e+00> : vector<81x24xf32>
    %3 = tpu.matmul %1, %2, %cst {dimension_numbers = #tpu.dot_dimension_numbers<[1], [0], [0], [1], [0, 0, 1, 1], [], []>} : vector<81x64xbf16>, vector<64x24xbf16>, vector<81x24xf32> -> vector<81x24xf32>
    %4 = vector.extract_strided_slice %3 {offsets = [0, 0], sizes = [81, 8], strides = [1, 1]} : vector<81x24xf32> to vector<81x8xf32>
    %5 = vector.extract_strided_slice %3 {offsets = [0, 8], sizes = [81, 8], strides = [1, 1]} : vector<81x24xf32> to vector<81x8xf32>
    %6 = vector.extract_strided_slice %3 {offsets = [0, 16], sizes = [81, 8], strides = [1, 1]} : vector<81x24xf32> to vector<81x8xf32>
    %7 = arith.mulf %4, %5 : vector<81x8xf32>
    %8 = arith.addf %4, %7 : vector<81x8xf32>
    %9 = arith.mulf %6, %8 : vector<81x8xf32>
    %10 = arith.addf %9, %8 : vector<81x8xf32>
    %cst_4 = arith.constant 0.000000e+00 : f32
    %11 = vector.broadcast %cst_4 : f32 to vector<6x6x8xf32>
    %c0_5 = arith.constant 0 : index
    %c0_6 = arith.constant 0 : index
    %c0_7 = arith.constant 0 : index
    %c0_8 = arith.constant 0 : index
    %c0_9 = arith.constant 0 : index
    %12 = vector.load %arg6[%c0_5, %c0_6, %c0_7, %c0_8, %c0_9] : memref<2x2x6x6x8xf32, #tpu.memory_space<vmem>>, vector<1x1x6x6x8xf32>
    %13 = vector.shape_cast %12 : vector<1x1x6x6x8xf32> to vector<6x6x8xf32>
    %14 = vector.shape_cast %11 : vector<6x6x8xf32> to vector<1x1x6x6x8xf32>
    tpu.vector_store %arg6[%c0_5, %c0_6, %c0_7, %c0_8, %c0_9], %14 {strides = array<i32>} : memref<2x2x6x6x8xf32, #tpu.memory_space<vmem>>, vector<1x1x6x6x8xf32>,
    %c0_10 = arith.constant 0 : index
    %c1 = arith.constant 1 : index
    %c0_11 = arith.constant 0 : index
    %c0_12 = arith.constant 0 : index
    %c0_13 = arith.constant 0 : index
    %15 = vector.load %arg6[%c0_10, %c1, %c0_11, %c0_12, %c0_13] : memref<2x2x6x6x8xf32, #tpu.memory_space<vmem>>, vector<1x1x6x6x8xf32>
    %16 = vector.shape_cast %15 : vector<1x1x6x6x8xf32> to vector<6x6x8xf32>
    %17 = vector.shape_cast %11 : vector<6x6x8xf32> to vector<1x1x6x6x8xf32>
    tpu.vector_store %arg6[%c0_10, %c1, %c0_11, %c0_12, %c0_13], %17 {strides = array<i32>} : memref<2x2x6x6x8xf32, #tpu.memory_space<vmem>>, vector<1x1x6x6x8xf32>,
    %c1_14 = arith.constant 1 : index
    %c0_15 = arith.constant 0 : index
    %c0_16 = arith.constant 0 : index
    %c0_17 = arith.constant 0 : index
    %c0_18 = arith.constant 0 : index
    %18 = vector.load %arg6[%c1_14, %c0_15, %c0_16, %c0_17, %c0_18] : memref<2x2x6x6x8xf32, #tpu.memory_space<vmem>>, vector<1x1x6x6x8xf32>
    %19 = vector.shape_cast %18 : vector<1x1x6x6x8xf32> to vector<6x6x8xf32>
    %20 = vector.shape_cast %11 : vector<6x6x8xf32> to vector<1x1x6x6x8xf32>
    tpu.vector_store %arg6[%c1_14, %c0_15, %c0_16, %c0_17, %c0_18], %20 {strides = array<i32>} : memref<2x2x6x6x8xf32, #tpu.memory_space<vmem>>, vector<1x1x6x6x8xf32>,
    %c1_19 = arith.constant 1 : index
    %c1_20 = arith.constant 1 : index
    %c0_21 = arith.constant 0 : index
    %c0_22 = arith.constant 0 : index
    %c0_23 = arith.constant 0 : index
    %21 = vector.load %arg6[%c1_19, %c1_20, %c0_21, %c0_22, %c0_23] : memref<2x2x6x6x8xf32, #tpu.memory_space<vmem>>, vector<1x1x6x6x8xf32>
    %22 = vector.shape_cast %21 : vector<1x1x6x6x8xf32> to vector<6x6x8xf32>
    %23 = vector.shape_cast %11 : vector<6x6x8xf32> to vector<1x1x6x6x8xf32>
    tpu.vector_store %arg6[%c1_19, %c1_20, %c0_21, %c0_22, %c0_23], %23 {strides = array<i32>} : memref<2x2x6x6x8xf32, #tpu.memory_space<vmem>>, vector<1x1x6x6x8xf32>,
    %24 = vector.extract_strided_slice %10 {offsets = [0, 0], sizes = [5, 8], strides = [1, 1]} : vector<81x8xf32> to vector<5x8xf32>
    %c0_24 = arith.constant 0 : index
    %c0_25 = arith.constant 0 : index
    %c1_26 = arith.constant 1 : index
    %c1_27 = arith.constant 1 : index
    %c0_28 = arith.constant 0 : index
    %25 = vector.load %arg6[%c0_24, %c0_25, %c1_26, %c1_27, %c0_28] : memref<2x2x6x6x8xf32, #tpu.memory_space<vmem>>, vector<1x1x1x5x8xf32>
    %26 = vector.shape_cast %25 : vector<1x1x1x5x8xf32> to vector<5x8xf32>
    %27 = vector.shape_cast %24 : vector<5x8xf32> to vector<1x1x1x5x8xf32>
    tpu.vector_store %arg6[%c0_24, %c0_25, %c1_26, %c1_27, %c0_28], %27 {strides = array<i32>} : memref<2x2x6x6x8xf32, #tpu.memory_space<vmem>>, vector<1x1x1x5x8xf32>,
    %28 = vector.extract_strided_slice %10 {offsets = [5, 0], sizes = [4, 8], strides = [1, 1]} : vector<81x8xf32> to vector<4x8xf32>
    %c0_29 = arith.constant 0 : index
    %c1_30 = arith.constant 1 : index
    %c1_31 = arith.constant 1 : index
    %c1_32 = arith.constant 1 : index
    %c0_33 = arith.constant 0 : index
    %29 = vector.load %arg6[%c0_29, %c1_30, %c1_31, %c1_32, %c0_33] : memref<2x2x6x6x8xf32, #tpu.memory_space<vmem>>, vector<1x1x1x4x8xf32>
    %30 = vector.shape_cast %29 : vector<1x1x1x4x8xf32> to vector<4x8xf32>
    %31 = vector.shape_cast %28 : vector<4x8xf32> to vector<1x1x1x4x8xf32>
    tpu.vector_store %arg6[%c0_29, %c1_30, %c1_31, %c1_32, %c0_33], %31 {strides = array<i32>} : memref<2x2x6x6x8xf32, #tpu.memory_space<vmem>>, vector<1x1x1x4x8xf32>,
    %32 = vector.extract_strided_slice %10 {offsets = [9, 0], sizes = [5, 8], strides = [1, 1]} : vector<81x8xf32> to vector<5x8xf32>
    %c1_34 = arith.constant 1 : index
    %c0_35 = arith.constant 0 : index
    %c1_36 = arith.constant 1 : index
    %c1_37 = arith.constant 1 : index
    %c0_38 = arith.constant 0 : index
    %33 = vector.load %arg6[%c1_34, %c0_35, %c1_36, %c1_37, %c0_38] : memref<2x2x6x6x8xf32, #tpu.memory_space<vmem>>, vector<1x1x1x5x8xf32>
    %34 = vector.shape_cast %33 : vector<1x1x1x5x8xf32> to vector<5x8xf32>
    %35 = vector.shape_cast %32 : vector<5x8xf32> to vector<1x1x1x5x8xf32>
    tpu.vector_store %arg6[%c1_34, %c0_35, %c1_36, %c1_37, %c0_38], %35 {strides = array<i32>} : memref<2x2x6x6x8xf32, #tpu.memory_space<vmem>>, vector<1x1x1x5x8xf32>,
    %36 = vector.extract_strided_slice %10 {offsets = [14, 0], sizes = [4, 8], strides = [1, 1]} : vector<81x8xf32> to vector<4x8xf32>
    %c1_39 = arith.constant 1 : index
    %c1_40 = arith.constant 1 : index
    %c1_41 = arith.constant 1 : index
    %c1_42 = arith.constant 1 : index
    %c0_43 = arith.constant 0 : index
    %37 = vector.load %arg6[%c1_39, %c1_40, %c1_41, %c1_42, %c0_43] : memref<2x2x6x6x8xf32, #tpu.memory_space<vmem>>, vector<1x1x1x4x8xf32>
    %38 = vector.shape_cast %37 : vector<1x1x1x4x8xf32> to vector<4x8xf32>
    %39 = vector.shape_cast %36 : vector<4x8xf32> to vector<1x1x1x4x8xf32>
    tpu.vector_store %arg6[%c1_39, %c1_40, %c1_41, %c1_42, %c0_43], %39 {strides = array<i32>} : memref<2x2x6x6x8xf32, #tpu.memory_space<vmem>>, vector<1x1x1x4x8xf32>,
    %40 = vector.extract_strided_slice %10 {offsets = [18, 0], sizes = [5, 8], strides = [1, 1]} : vector<81x8xf32> to vector<5x8xf32>
    %c0_44 = arith.constant 0 : index
    %c0_45 = arith.constant 0 : index
    %c2 = arith.constant 2 : index
    %c1_46 = arith.constant 1 : index
    %c0_47 = arith.constant 0 : index
    %41 = vector.load %arg6[%c0_44, %c0_45, %c2, %c1_46, %c0_47] : memref<2x2x6x6x8xf32, #tpu.memory_space<vmem>>, vector<1x1x1x5x8xf32>
    %42 = vector.shape_cast %41 : vector<1x1x1x5x8xf32> to vector<5x8xf32>
    %43 = vector.shape_cast %40 : vector<5x8xf32> to vector<1x1x1x5x8xf32>
    tpu.vector_store %arg6[%c0_44, %c0_45, %c2, %c1_46, %c0_47], %43 {strides = array<i32>} : memref<2x2x6x6x8xf32, #tpu.memory_space<vmem>>, vector<1x1x1x5x8xf32>,
    %44 = vector.extract_strided_slice %10 {offsets = [23, 0], sizes = [4, 8], strides = [1, 1]} : vector<81x8xf32> to vector<4x8xf32>
    %c0_48 = arith.constant 0 : index
    %c1_49 = arith.constant 1 : index
    %c2_50 = arith.constant 2 : index
    %c1_51 = arith.constant 1 : index
    %c0_52 = arith.constant 0 : index
    %45 = vector.load %arg6[%c0_48, %c1_49, %c2_50, %c1_51, %c0_52] : memref<2x2x6x6x8xf32, #tpu.memory_space<vmem>>, vector<1x1x1x4x8xf32>
    %46 = vector.shape_cast %45 : vector<1x1x1x4x8xf32> to vector<4x8xf32>
    %47 = vector.shape_cast %44 : vector<4x8xf32> to vector<1x1x1x4x8xf32>
    tpu.vector_store %arg6[%c0_48, %c1_49, %c2_50, %c1_51, %c0_52], %47 {strides = array<i32>} : memref<2x2x6x6x8xf32, #tpu.memory_space<vmem>>, vector<1x1x1x4x8xf32>,
    %48 = vector.extract_strided_slice %10 {offsets = [27, 0], sizes = [5, 8], strides = [1, 1]} : vector<81x8xf32> to vector<5x8xf32>
    %c1_53 = arith.constant 1 : index
    %c0_54 = arith.constant 0 : index
    %c2_55 = arith.constant 2 : index
    %c1_56 = arith.constant 1 : index
    %c0_57 = arith.constant 0 : index
    %49 = vector.load %arg6[%c1_53, %c0_54, %c2_55, %c1_56, %c0_57] : memref<2x2x6x6x8xf32, #tpu.memory_space<vmem>>, vector<1x1x1x5x8xf32>
    %50 = vector.shape_cast %49 : vector<1x1x1x5x8xf32> to vector<5x8xf32>
    %51 = vector.shape_cast %48 : vector<5x8xf32> to vector<1x1x1x5x8xf32>
    tpu.vector_store %arg6[%c1_53, %c0_54, %c2_55, %c1_56, %c0_57], %51 {strides = array<i32>} : memref<2x2x6x6x8xf32, #tpu.memory_space<vmem>>, vector<1x1x1x5x8xf32>,
    %52 = vector.extract_strided_slice %10 {offsets = [32, 0], sizes = [4, 8], strides = [1, 1]} : vector<81x8xf32> to vector<4x8xf32>
    %c1_58 = arith.constant 1 : index
    %c1_59 = arith.constant 1 : index
    %c2_60 = arith.constant 2 : index
    %c1_61 = arith.constant 1 : index
    %c0_62 = arith.constant 0 : index
    %53 = vector.load %arg6[%c1_58, %c1_59, %c2_60, %c1_61, %c0_62] : memref<2x2x6x6x8xf32, #tpu.memory_space<vmem>>, vector<1x1x1x4x8xf32>
    %54 = vector.shape_cast %53 : vector<1x1x1x4x8xf32> to vector<4x8xf32>
    %55 = vector.shape_cast %52 : vector<4x8xf32> to vector<1x1x1x4x8xf32>
    tpu.vector_store %arg6[%c1_58, %c1_59, %c2_60, %c1_61, %c0_62], %55 {strides = array<i32>} : memref<2x2x6x6x8xf32, #tpu.memory_space<vmem>>, vector<1x1x1x4x8xf32>,
    %56 = vector.extract_strided_slice %10 {offsets = [36, 0], sizes = [5, 8], strides = [1, 1]} : vector<81x8xf32> to vector<5x8xf32>
    %c0_63 = arith.constant 0 : index
    %c0_64 = arith.constant 0 : index
    %c3 = arith.constant 3 : index
    %c1_65 = arith.constant 1 : index
    %c0_66 = arith.constant 0 : index
    %57 = vector.load %arg6[%c0_63, %c0_64, %c3, %c1_65, %c0_66] : memref<2x2x6x6x8xf32, #tpu.memory_space<vmem>>, vector<1x1x1x5x8xf32>
    %58 = vector.shape_cast %57 : vector<1x1x1x5x8xf32> to vector<5x8xf32>
    %59 = vector.shape_cast %56 : vector<5x8xf32> to vector<1x1x1x5x8xf32>
    tpu.vector_store %arg6[%c0_63, %c0_64, %c3, %c1_65, %c0_66], %59 {strides = array<i32>} : memref<2x2x6x6x8xf32, #tpu.memory_space<vmem>>, vector<1x1x1x5x8xf32>,
    %60 = vector.extract_strided_slice %10 {offsets = [41, 0], sizes = [4, 8], strides = [1, 1]} : vector<81x8xf32> to vector<4x8xf32>
    %c0_67 = arith.constant 0 : index
    %c1_68 = arith.constant 1 : index
    %c3_69 = arith.constant 3 : index
    %c1_70 = arith.constant 1 : index
    %c0_71 = arith.constant 0 : index
    %61 = vector.load %arg6[%c0_67, %c1_68, %c3_69, %c1_70, %c0_71] : memref<2x2x6x6x8xf32, #tpu.memory_space<vmem>>, vector<1x1x1x4x8xf32>
    %62 = vector.shape_cast %61 : vector<1x1x1x4x8xf32> to vector<4x8xf32>
    %63 = vector.shape_cast %60 : vector<4x8xf32> to vector<1x1x1x4x8xf32>
    tpu.vector_store %arg6[%c0_67, %c1_68, %c3_69, %c1_70, %c0_71], %63 {strides = array<i32>} : memref<2x2x6x6x8xf32, #tpu.memory_space<vmem>>, vector<1x1x1x4x8xf32>,
    %64 = vector.extract_strided_slice %10 {offsets = [45, 0], sizes = [5, 8], strides = [1, 1]} : vector<81x8xf32> to vector<5x8xf32>
    %c1_72 = arith.constant 1 : index
    %c0_73 = arith.constant 0 : index
    %c3_74 = arith.constant 3 : index
    %c1_75 = arith.constant 1 : index
    %c0_76 = arith.constant 0 : index
    %65 = vector.load %arg6[%c1_72, %c0_73, %c3_74, %c1_75, %c0_76] : memref<2x2x6x6x8xf32, #tpu.memory_space<vmem>>, vector<1x1x1x5x8xf32>
    %66 = vector.shape_cast %65 : vector<1x1x1x5x8xf32> to vector<5x8xf32>
    %67 = vector.shape_cast %64 : vector<5x8xf32> to vector<1x1x1x5x8xf32>
    tpu.vector_store %arg6[%c1_72, %c0_73, %c3_74, %c1_75, %c0_76], %67 {strides = array<i32>} : memref<2x2x6x6x8xf32, #tpu.memory_space<vmem>>, vector<1x1x1x5x8xf32>,
    %68 = vector.extract_strided_slice %10 {offsets = [50, 0], sizes = [4, 8], strides = [1, 1]} : vector<81x8xf32> to vector<4x8xf32>
    %c1_77 = arith.constant 1 : index
    %c1_78 = arith.constant 1 : index
    %c3_79 = arith.constant 3 : index
    %c1_80 = arith.constant 1 : index
    %c0_81 = arith.constant 0 : index
    %69 = vector.load %arg6[%c1_77, %c1_78, %c3_79, %c1_80, %c0_81] : memref<2x2x6x6x8xf32, #tpu.memory_space<vmem>>, vector<1x1x1x4x8xf32>
    %70 = vector.shape_cast %69 : vector<1x1x1x4x8xf32> to vector<4x8xf32>
    %71 = vector.shape_cast %68 : vector<4x8xf32> to vector<1x1x1x4x8xf32>
    tpu.vector_store %arg6[%c1_77, %c1_78, %c3_79, %c1_80, %c0_81], %71 {strides = array<i32>} : memref<2x2x6x6x8xf32, #tpu.memory_space<vmem>>, vector<1x1x1x4x8xf32>,
    %72 = vector.extract_strided_slice %10 {offsets = [54, 0], sizes = [5, 8], strides = [1, 1]} : vector<81x8xf32> to vector<5x8xf32>
    %c0_82 = arith.constant 0 : index
    %c0_83 = arith.constant 0 : index
    %c4 = arith.constant 4 : index
    %c1_84 = arith.constant 1 : index
    %c0_85 = arith.constant 0 : index
    %73 = vector.load %arg6[%c0_82, %c0_83, %c4, %c1_84, %c0_85] : memref<2x2x6x6x8xf32, #tpu.memory_space<vmem>>, vector<1x1x1x5x8xf32>
    %74 = vector.shape_cast %73 : vector<1x1x1x5x8xf32> to vector<5x8xf32>
    %75 = vector.shape_cast %72 : vector<5x8xf32> to vector<1x1x1x5x8xf32>
    tpu.vector_store %arg6[%c0_82, %c0_83, %c4, %c1_84, %c0_85], %75 {strides = array<i32>} : memref<2x2x6x6x8xf32, #tpu.memory_space<vmem>>, vector<1x1x1x5x8xf32>,
    %76 = vector.extract_strided_slice %10 {offsets = [59, 0], sizes = [4, 8], strides = [1, 1]} : vector<81x8xf32> to vector<4x8xf32>
    %c0_86 = arith.constant 0 : index
    %c1_87 = arith.constant 1 : index
    %c4_88 = arith.constant 4 : index
    %c1_89 = arith.constant 1 : index
    %c0_90 = arith.constant 0 : index
    %77 = vector.load %arg6[%c0_86, %c1_87, %c4_88, %c1_89, %c0_90] : memref<2x2x6x6x8xf32, #tpu.memory_space<vmem>>, vector<1x1x1x4x8xf32>
    %78 = vector.shape_cast %77 : vector<1x1x1x4x8xf32> to vector<4x8xf32>
    %79 = vector.shape_cast %76 : vector<4x8xf32> to vector<1x1x1x4x8xf32>
    tpu.vector_store %arg6[%c0_86, %c1_87, %c4_88, %c1_89, %c0_90], %79 {strides = array<i32>} : memref<2x2x6x6x8xf32, #tpu.memory_space<vmem>>, vector<1x1x1x4x8xf32>,
    %80 = vector.extract_strided_slice %10 {offsets = [63, 0], sizes = [5, 8], strides = [1, 1]} : vector<81x8xf32> to vector<5x8xf32>
    %c1_91 = arith.constant 1 : index
    %c0_92 = arith.constant 0 : index
    %c4_93 = arith.constant 4 : index
    %c1_94 = arith.constant 1 : index
    %c0_95 = arith.constant 0 : index
    %81 = vector.load %arg6[%c1_91, %c0_92, %c4_93, %c1_94, %c0_95] : memref<2x2x6x6x8xf32, #tpu.memory_space<vmem>>, vector<1x1x1x5x8xf32>
    %82 = vector.shape_cast %81 : vector<1x1x1x5x8xf32> to vector<5x8xf32>
    %83 = vector.shape_cast %80 : vector<5x8xf32> to vector<1x1x1x5x8xf32>
    tpu.vector_store %arg6[%c1_91, %c0_92, %c4_93, %c1_94, %c0_95], %83 {strides = array<i32>} : memref<2x2x6x6x8xf32, #tpu.memory_space<vmem>>, vector<1x1x1x5x8xf32>,
    %84 = vector.extract_strided_slice %10 {offsets = [68, 0], sizes = [4, 8], strides = [1, 1]} : vector<81x8xf32> to vector<4x8xf32>
    %c1_96 = arith.constant 1 : index
    %c1_97 = arith.constant 1 : index
    %c4_98 = arith.constant 4 : index
    %c1_99 = arith.constant 1 : index
    %c0_100 = arith.constant 0 : index
    %85 = vector.load %arg6[%c1_96, %c1_97, %c4_98, %c1_99, %c0_100] : memref<2x2x6x6x8xf32, #tpu.memory_space<vmem>>, vector<1x1x1x4x8xf32>
    %86 = vector.shape_cast %85 : vector<1x1x1x4x8xf32> to vector<4x8xf32>
    %87 = vector.shape_cast %84 : vector<4x8xf32> to vector<1x1x1x4x8xf32>
    tpu.vector_store %arg6[%c1_96, %c1_97, %c4_98, %c1_99, %c0_100], %87 {strides = array<i32>} : memref<2x2x6x6x8xf32, #tpu.memory_space<vmem>>, vector<1x1x1x4x8xf32>,
    %88 = vector.extract_strided_slice %10 {offsets = [72, 0], sizes = [5, 8], strides = [1, 1]} : vector<81x8xf32> to vector<5x8xf32>
    %c0_101 = arith.constant 0 : index
    %c0_102 = arith.constant 0 : index
    %c5 = arith.constant 5 : index
    %c1_103 = arith.constant 1 : index
    %c0_104 = arith.constant 0 : index
    %89 = vector.load %arg6[%c0_101, %c0_102, %c5, %c1_103, %c0_104] : memref<2x2x6x6x8xf32, #tpu.memory_space<vmem>>, vector<1x1x1x5x8xf32>
    %90 = vector.shape_cast %89 : vector<1x1x1x5x8xf32> to vector<5x8xf32>
    %91 = vector.shape_cast %88 : vector<5x8xf32> to vector<1x1x1x5x8xf32>
    tpu.vector_store %arg6[%c0_101, %c0_102, %c5, %c1_103, %c0_104], %91 {strides = array<i32>} : memref<2x2x6x6x8xf32, #tpu.memory_space<vmem>>, vector<1x1x1x5x8xf32>,
    %92 = vector.extract_strided_slice %10 {offsets = [77, 0], sizes = [4, 8], strides = [1, 1]} : vector<81x8xf32> to vector<4x8xf32>
    %c0_105 = arith.constant 0 : index
    %c1_106 = arith.constant 1 : index
    %c5_107 = arith.constant 5 : index
    %c1_108 = arith.constant 1 : index
    %c0_109 = arith.constant 0 : index
    %93 = vector.load %arg6[%c0_105, %c1_106, %c5_107, %c1_108, %c0_109] : memref<2x2x6x6x8xf32, #tpu.memory_space<vmem>>, vector<1x1x1x4x8xf32>
    %94 = vector.shape_cast %93 : vector<1x1x1x4x8xf32> to vector<4x8xf32>
    %95 = vector.shape_cast %92 : vector<4x8xf32> to vector<1x1x1x4x8xf32>
    tpu.vector_store %arg6[%c0_105, %c1_106, %c5_107, %c1_108, %c0_109], %95 {strides = array<i32>} : memref<2x2x6x6x8xf32, #tpu.memory_space<vmem>>, vector<1x1x1x4x8xf32>,
    %cst_110 = arith.constant 0.000000e+00 : f32
    %96 = vector.broadcast %cst_110 : f32 to vector<5x5x8xf32>
    %cst_111 = arith.constant 0.000000e+00 : f32
    %97 = vector.broadcast %cst_111 : f32 to vector<5x5x8xf32>
    %cst_112 = arith.constant 0.000000e+00 : f32
    %98 = vector.broadcast %cst_112 : f32 to vector<5x5x8xf32>
    %c0_113 = arith.constant 0 : index
    %c0_114 = arith.constant 0 : index
    %c0_115 = arith.constant 0 : index
    %c0_116 = arith.constant 0 : index
    %c0_117 = arith.constant 0 : index
    %99 = vector.load %arg6[%c0_113, %c0_114, %c0_115, %c0_116, %c0_117] : memref<2x2x6x6x8xf32, #tpu.memory_space<vmem>>, vector<1x1x5x5x8xf32>
    %100 = vector.shape_cast %99 : vector<1x1x5x5x8xf32> to vector<5x5x8xf32>
    %c0_118 = arith.constant 0 : index
    %c0_119 = arith.constant 0 : index
    %c0_120 = arith.constant 0 : index
    %c0_121 = arith.constant 0 : index
    %101 = vector.load %arg3[%c0_118, %c0_119, %c0_120, %c0_121] : memref<4x4x3x8xf32, #tpu.memory_space<vmem>>, vector<1x1x1x8xf32>
    %102 = vector.shape_cast %101 : vector<1x1x1x8xf32> to vector<8xf32>
    %103 = vector.shape_cast %102 : vector<8xf32> to vector<1x1x8xf32>
    %104 = vector.broadcast %103 : vector<1x1x8xf32> to vector<5x5x8xf32>
    %105 = arith.mulf %100, %104 : vector<5x5x8xf32>
    %106 = arith.addf %96, %105 : vector<5x5x8xf32>
    %c0_122 = arith.constant 0 : index
    %c0_123 = arith.constant 0 : index
    %c1_124 = arith.constant 1 : index
    %c0_125 = arith.constant 0 : index
    %107 = vector.load %arg3[%c0_122, %c0_123, %c1_124, %c0_125] : memref<4x4x3x8xf32, #tpu.memory_space<vmem>>, vector<1x1x1x8xf32>
    %108 = vector.shape_cast %107 : vector<1x1x1x8xf32> to vector<8xf32>
    %109 = vector.shape_cast %108 : vector<8xf32> to vector<1x1x8xf32>
    %110 = vector.broadcast %109 : vector<1x1x8xf32> to vector<5x5x8xf32>
    %111 = arith.mulf %100, %110 : vector<5x5x8xf32>
    %112 = arith.addf %97, %111 : vector<5x5x8xf32>
    %c0_126 = arith.constant 0 : index
    %c0_127 = arith.constant 0 : index
    %c2_128 = arith.constant 2 : index
    %c0_129 = arith.constant 0 : index
    %113 = vector.load %arg3[%c0_126, %c0_127, %c2_128, %c0_129] : memref<4x4x3x8xf32, #tpu.memory_space<vmem>>, vector<1x1x1x8xf32>
    %114 = vector.shape_cast %113 : vector<1x1x1x8xf32> to vector<8xf32>
    %115 = vector.shape_cast %114 : vector<8xf32> to vector<1x1x8xf32>
    %116 = vector.broadcast %115 : vector<1x1x8xf32> to vector<5x5x8xf32>
    %117 = arith.mulf %100, %116 : vector<5x5x8xf32>
    %118 = arith.addf %98, %117 : vector<5x5x8xf32>
    %c0_130 = arith.constant 0 : index
    %c1_131 = arith.constant 1 : index
    %c0_132 = arith.constant 0 : index
    %c0_133 = arith.constant 0 : index
    %c0_134 = arith.constant 0 : index
    %119 = vector.load %arg6[%c0_130, %c1_131, %c0_132, %c0_133, %c0_134] : memref<2x2x6x6x8xf32, #tpu.memory_space<vmem>>, vector<1x1x5x5x8xf32>
    %120 = vector.shape_cast %119 : vector<1x1x5x5x8xf32> to vector<5x5x8xf32>
    %c0_135 = arith.constant 0 : index
    %c1_136 = arith.constant 1 : index
    %c0_137 = arith.constant 0 : index
    %c0_138 = arith.constant 0 : index
    %121 = vector.load %arg3[%c0_135, %c1_136, %c0_137, %c0_138] : memref<4x4x3x8xf32, #tpu.memory_space<vmem>>, vector<1x1x1x8xf32>
    %122 = vector.shape_cast %121 : vector<1x1x1x8xf32> to vector<8xf32>
    %123 = vector.shape_cast %122 : vector<8xf32> to vector<1x1x8xf32>
    %124 = vector.broadcast %123 : vector<1x1x8xf32> to vector<5x5x8xf32>
    %125 = arith.mulf %120, %124 : vector<5x5x8xf32>
    %126 = arith.addf %106, %125 : vector<5x5x8xf32>
    %c0_139 = arith.constant 0 : index
    %c1_140 = arith.constant 1 : index
    %c1_141 = arith.constant 1 : index
    %c0_142 = arith.constant 0 : index
    %127 = vector.load %arg3[%c0_139, %c1_140, %c1_141, %c0_142] : memref<4x4x3x8xf32, #tpu.memory_space<vmem>>, vector<1x1x1x8xf32>
    %128 = vector.shape_cast %127 : vector<1x1x1x8xf32> to vector<8xf32>
    %129 = vector.shape_cast %128 : vector<8xf32> to vector<1x1x8xf32>
    %130 = vector.broadcast %129 : vector<1x1x8xf32> to vector<5x5x8xf32>
    %131 = arith.mulf %120, %130 : vector<5x5x8xf32>
    %132 = arith.addf %112, %131 : vector<5x5x8xf32>
    %c0_143 = arith.constant 0 : index
    %c1_144 = arith.constant 1 : index
    %c2_145 = arith.constant 2 : index
    %c0_146 = arith.constant 0 : index
    %133 = vector.load %arg3[%c0_143, %c1_144, %c2_145, %c0_146] : memref<4x4x3x8xf32, #tpu.memory_space<vmem>>, vector<1x1x1x8xf32>
    %134 = vector.shape_cast %133 : vector<1x1x1x8xf32> to vector<8xf32>
    %135 = vector.shape_cast %134 : vector<8xf32> to vector<1x1x8xf32>
    %136 = vector.broadcast %135 : vector<1x1x8xf32> to vector<5x5x8xf32>
    %137 = arith.mulf %120, %136 : vector<5x5x8xf32>
    %138 = arith.addf %118, %137 : vector<5x5x8xf32>
    %c0_147 = arith.constant 0 : index
    %c0_148 = arith.constant 0 : index
    %c0_149 = arith.constant 0 : index
    %c1_150 = arith.constant 1 : index
    %c0_151 = arith.constant 0 : index
    %139 = vector.load %arg6[%c0_147, %c0_148, %c0_149, %c1_150, %c0_151] : memref<2x2x6x6x8xf32, #tpu.memory_space<vmem>>, vector<1x1x5x5x8xf32>
    %140 = vector.shape_cast %139 : vector<1x1x5x5x8xf32> to vector<5x5x8xf32>
    %c0_152 = arith.constant 0 : index
    %c2_153 = arith.constant 2 : index
    %c0_154 = arith.constant 0 : index
    %c0_155 = arith.constant 0 : index
    %141 = vector.load %arg3[%c0_152, %c2_153, %c0_154, %c0_155] : memref<4x4x3x8xf32, #tpu.memory_space<vmem>>, vector<1x1x1x8xf32>
    %142 = vector.shape_cast %141 : vector<1x1x1x8xf32> to vector<8xf32>
    %143 = vector.shape_cast %142 : vector<8xf32> to vector<1x1x8xf32>
    %144 = vector.broadcast %143 : vector<1x1x8xf32> to vector<5x5x8xf32>
    %145 = arith.mulf %140, %144 : vector<5x5x8xf32>
    %146 = arith.addf %126, %145 : vector<5x5x8xf32>
    %c0_156 = arith.constant 0 : index
    %c2_157 = arith.constant 2 : index
    %c1_158 = arith.constant 1 : index
    %c0_159 = arith.constant 0 : index
    %147 = vector.load %arg3[%c0_156, %c2_157, %c1_158, %c0_159] : memref<4x4x3x8xf32, #tpu.memory_space<vmem>>, vector<1x1x1x8xf32>
    %148 = vector.shape_cast %147 : vector<1x1x1x8xf32> to vector<8xf32>
    %149 = vector.shape_cast %148 : vector<8xf32> to vector<1x1x8xf32>
    %150 = vector.broadcast %149 : vector<1x1x8xf32> to vector<5x5x8xf32>
    %151 = arith.mulf %140, %150 : vector<5x5x8xf32>
    %152 = arith.addf %132, %151 : vector<5x5x8xf32>
    %c0_160 = arith.constant 0 : index
    %c2_161 = arith.constant 2 : index
    %c2_162 = arith.constant 2 : index
    %c0_163 = arith.constant 0 : index
    %153 = vector.load %arg3[%c0_160, %c2_161, %c2_162, %c0_163] : memref<4x4x3x8xf32, #tpu.memory_space<vmem>>, vector<1x1x1x8xf32>
    %154 = vector.shape_cast %153 : vector<1x1x1x8xf32> to vector<8xf32>
    %155 = vector.shape_cast %154 : vector<8xf32> to vector<1x1x8xf32>
    %156 = vector.broadcast %155 : vector<1x1x8xf32> to vector<5x5x8xf32>
    %157 = arith.mulf %140, %156 : vector<5x5x8xf32>
    %158 = arith.addf %138, %157 : vector<5x5x8xf32>
    %c0_164 = arith.constant 0 : index
    %c1_165 = arith.constant 1 : index
    %c0_166 = arith.constant 0 : index
    %c1_167 = arith.constant 1 : index
    %c0_168 = arith.constant 0 : index
    %159 = vector.load %arg6[%c0_164, %c1_165, %c0_166, %c1_167, %c0_168] : memref<2x2x6x6x8xf32, #tpu.memory_space<vmem>>, vector<1x1x5x5x8xf32>
    %160 = vector.shape_cast %159 : vector<1x1x5x5x8xf32> to vector<5x5x8xf32>
    %c0_169 = arith.constant 0 : index
    %c3_170 = arith.constant 3 : index
    %c0_171 = arith.constant 0 : index
    %c0_172 = arith.constant 0 : index
    %161 = vector.load %arg3[%c0_169, %c3_170, %c0_171, %c0_172] : memref<4x4x3x8xf32, #tpu.memory_space<vmem>>, vector<1x1x1x8xf32>
    %162 = vector.shape_cast %161 : vector<1x1x1x8xf32> to vector<8xf32>
    %163 = vector.shape_cast %162 : vector<8xf32> to vector<1x1x8xf32>
    %164 = vector.broadcast %163 : vector<1x1x8xf32> to vector<5x5x8xf32>
    %165 = arith.mulf %160, %164 : vector<5x5x8xf32>
    %166 = arith.addf %146, %165 : vector<5x5x8xf32>
    %c0_173 = arith.constant 0 : index
    %c3_174 = arith.constant 3 : index
    %c1_175 = arith.constant 1 : index
    %c0_176 = arith.constant 0 : index
    %167 = vector.load %arg3[%c0_173, %c3_174, %c1_175, %c0_176] : memref<4x4x3x8xf32, #tpu.memory_space<vmem>>, vector<1x1x1x8xf32>
    %168 = vector.shape_cast %167 : vector<1x1x1x8xf32> to vector<8xf32>
    %169 = vector.shape_cast %168 : vector<8xf32> to vector<1x1x8xf32>
    %170 = vector.broadcast %169 : vector<1x1x8xf32> to vector<5x5x8xf32>
    %171 = arith.mulf %160, %170 : vector<5x5x8xf32>
    %172 = arith.addf %152, %171 : vector<5x5x8xf32>
    %c0_177 = arith.constant 0 : index
    %c3_178 = arith.constant 3 : index
    %c2_179 = arith.constant 2 : index
    %c0_180 = arith.constant 0 : index
    %173 = vector.load %arg3[%c0_177, %c3_178, %c2_179, %c0_180] : memref<4x4x3x8xf32, #tpu.memory_space<vmem>>, vector<1x1x1x8xf32>
    %174 = vector.shape_cast %173 : vector<1x1x1x8xf32> to vector<8xf32>
    %175 = vector.shape_cast %174 : vector<8xf32> to vector<1x1x8xf32>
    %176 = vector.broadcast %175 : vector<1x1x8xf32> to vector<5x5x8xf32>
    %177 = arith.mulf %160, %176 : vector<5x5x8xf32>
    %178 = arith.addf %158, %177 : vector<5x5x8xf32>
    %c1_181 = arith.constant 1 : index
    %c0_182 = arith.constant 0 : index
    %c0_183 = arith.constant 0 : index
    %c0_184 = arith.constant 0 : index
    %c0_185 = arith.constant 0 : index
    %179 = vector.load %arg6[%c1_181, %c0_182, %c0_183, %c0_184, %c0_185] : memref<2x2x6x6x8xf32, #tpu.memory_space<vmem>>, vector<1x1x5x5x8xf32>
    %180 = vector.shape_cast %179 : vector<1x1x5x5x8xf32> to vector<5x5x8xf32>
    %c1_186 = arith.constant 1 : index
    %c0_187 = arith.constant 0 : index
    %c0_188 = arith.constant 0 : index
    %c0_189 = arith.constant 0 : index
    %181 = vector.load %arg3[%c1_186, %c0_187, %c0_188, %c0_189] : memref<4x4x3x8xf32, #tpu.memory_space<vmem>>, vector<1x1x1x8xf32>
    %182 = vector.shape_cast %181 : vector<1x1x1x8xf32> to vector<8xf32>
    %183 = vector.shape_cast %182 : vector<8xf32> to vector<1x1x8xf32>
    %184 = vector.broadcast %183 : vector<1x1x8xf32> to vector<5x5x8xf32>
    %185 = arith.mulf %180, %184 : vector<5x5x8xf32>
    %186 = arith.addf %166, %185 : vector<5x5x8xf32>
    %c1_190 = arith.constant 1 : index
    %c0_191 = arith.constant 0 : index
    %c1_192 = arith.constant 1 : index
    %c0_193 = arith.constant 0 : index
    %187 = vector.load %arg3[%c1_190, %c0_191, %c1_192, %c0_193] : memref<4x4x3x8xf32, #tpu.memory_space<vmem>>, vector<1x1x1x8xf32>
    %188 = vector.shape_cast %187 : vector<1x1x1x8xf32> to vector<8xf32>
    %189 = vector.shape_cast %188 : vector<8xf32> to vector<1x1x8xf32>
    %190 = vector.broadcast %189 : vector<1x1x8xf32> to vector<5x5x8xf32>
    %191 = arith.mulf %180, %190 : vector<5x5x8xf32>
    %192 = arith.addf %172, %191 : vector<5x5x8xf32>
    %c1_194 = arith.constant 1 : index
    %c0_195 = arith.constant 0 : index
    %c2_196 = arith.constant 2 : index
    %c0_197 = arith.constant 0 : index
    %193 = vector.load %arg3[%c1_194, %c0_195, %c2_196, %c0_197] : memref<4x4x3x8xf32, #tpu.memory_space<vmem>>, vector<1x1x1x8xf32>
    %194 = vector.shape_cast %193 : vector<1x1x1x8xf32> to vector<8xf32>
    %195 = vector.shape_cast %194 : vector<8xf32> to vector<1x1x8xf32>
    %196 = vector.broadcast %195 : vector<1x1x8xf32> to vector<5x5x8xf32>
    %197 = arith.mulf %180, %196 : vector<5x5x8xf32>
    %198 = arith.addf %178, %197 : vector<5x5x8xf32>
    %c1_198 = arith.constant 1 : index
    %c1_199 = arith.constant 1 : index
    %c0_200 = arith.constant 0 : index
    %c0_201 = arith.constant 0 : index
    %c0_202 = arith.constant 0 : index
    %199 = vector.load %arg6[%c1_198, %c1_199, %c0_200, %c0_201, %c0_202] : memref<2x2x6x6x8xf32, #tpu.memory_space<vmem>>, vector<1x1x5x5x8xf32>
    %200 = vector.shape_cast %199 : vector<1x1x5x5x8xf32> to vector<5x5x8xf32>
    %c1_203 = arith.constant 1 : index
    %c1_204 = arith.constant 1 : index
    %c0_205 = arith.constant 0 : index
    %c0_206 = arith.constant 0 : index
    %201 = vector.load %arg3[%c1_203, %c1_204, %c0_205, %c0_206] : memref<4x4x3x8xf32, #tpu.memory_space<vmem>>, vector<1x1x1x8xf32>
    %202 = vector.shape_cast %201 : vector<1x1x1x8xf32> to vector<8xf32>
    %203 = vector.shape_cast %202 : vector<8xf32> to vector<1x1x8xf32>
    %204 = vector.broadcast %203 : vector<1x1x8xf32> to vector<5x5x8xf32>
    %205 = arith.mulf %200, %204 : vector<5x5x8xf32>
    %206 = arith.addf %186, %205 : vector<5x5x8xf32>
    %c1_207 = arith.constant 1 : index
    %c1_208 = arith.constant 1 : index
    %c1_209 = arith.constant 1 : index
    %c0_210 = arith.constant 0 : index
    %207 = vector.load %arg3[%c1_207, %c1_208, %c1_209, %c0_210] : memref<4x4x3x8xf32, #tpu.memory_space<vmem>>, vector<1x1x1x8xf32>
    %208 = vector.shape_cast %207 : vector<1x1x1x8xf32> to vector<8xf32>
    %209 = vector.shape_cast %208 : vector<8xf32> to vector<1x1x8xf32>
    %210 = vector.broadcast %209 : vector<1x1x8xf32> to vector<5x5x8xf32>
    %211 = arith.mulf %200, %210 : vector<5x5x8xf32>
    %212 = arith.addf %192, %211 : vector<5x5x8xf32>
    %c1_211 = arith.constant 1 : index
    %c1_212 = arith.constant 1 : index
    %c2_213 = arith.constant 2 : index
    %c0_214 = arith.constant 0 : index
    %213 = vector.load %arg3[%c1_211, %c1_212, %c2_213, %c0_214] : memref<4x4x3x8xf32, #tpu.memory_space<vmem>>, vector<1x1x1x8xf32>
    %214 = vector.shape_cast %213 : vector<1x1x1x8xf32> to vector<8xf32>
    %215 = vector.shape_cast %214 : vector<8xf32> to vector<1x1x8xf32>
    %216 = vector.broadcast %215 : vector<1x1x8xf32> to vector<5x5x8xf32>
    %217 = arith.mulf %200, %216 : vector<5x5x8xf32>
    %218 = arith.addf %198, %217 : vector<5x5x8xf32>
    %c1_215 = arith.constant 1 : index
    %c0_216 = arith.constant 0 : index
    %c0_217 = arith.constant 0 : index
    %c1_218 = arith.constant 1 : index
    %c0_219 = arith.constant 0 : index
    %219 = vector.load %arg6[%c1_215, %c0_216, %c0_217, %c1_218, %c0_219] : memref<2x2x6x6x8xf32, #tpu.memory_space<vmem>>, vector<1x1x5x5x8xf32>
    %220 = vector.shape_cast %219 : vector<1x1x5x5x8xf32> to vector<5x5x8xf32>
    %c1_220 = arith.constant 1 : index
    %c2_221 = arith.constant 2 : index
    %c0_222 = arith.constant 0 : index
    %c0_223 = arith.constant 0 : index
    %221 = vector.load %arg3[%c1_220, %c2_221, %c0_222, %c0_223] : memref<4x4x3x8xf32, #tpu.memory_space<vmem>>, vector<1x1x1x8xf32>
    %222 = vector.shape_cast %221 : vector<1x1x1x8xf32> to vector<8xf32>
    %223 = vector.shape_cast %222 : vector<8xf32> to vector<1x1x8xf32>
    %224 = vector.broadcast %223 : vector<1x1x8xf32> to vector<5x5x8xf32>
    %225 = arith.mulf %220, %224 : vector<5x5x8xf32>
    %226 = arith.addf %206, %225 : vector<5x5x8xf32>
    %c1_224 = arith.constant 1 : index
    %c2_225 = arith.constant 2 : index
    %c1_226 = arith.constant 1 : index
    %c0_227 = arith.constant 0 : index
    %227 = vector.load %arg3[%c1_224, %c2_225, %c1_226, %c0_227] : memref<4x4x3x8xf32, #tpu.memory_space<vmem>>, vector<1x1x1x8xf32>
    %228 = vector.shape_cast %227 : vector<1x1x1x8xf32> to vector<8xf32>
    %229 = vector.shape_cast %228 : vector<8xf32> to vector<1x1x8xf32>
    %230 = vector.broadcast %229 : vector<1x1x8xf32> to vector<5x5x8xf32>
    %231 = arith.mulf %220, %230 : vector<5x5x8xf32>
    %232 = arith.addf %212, %231 : vector<5x5x8xf32>
    %c1_228 = arith.constant 1 : index
    %c2_229 = arith.constant 2 : index
    %c2_230 = arith.constant 2 : index
    %c0_231 = arith.constant 0 : index
    %233 = vector.load %arg3[%c1_228, %c2_229, %c2_230, %c0_231] : memref<4x4x3x8xf32, #tpu.memory_space<vmem>>, vector<1x1x1x8xf32>
    %234 = vector.shape_cast %233 : vector<1x1x1x8xf32> to vector<8xf32>
    %235 = vector.shape_cast %234 : vector<8xf32> to vector<1x1x8xf32>
    %236 = vector.broadcast %235 : vector<1x1x8xf32> to vector<5x5x8xf32>
    %237 = arith.mulf %220, %236 : vector<5x5x8xf32>
    %238 = arith.addf %218, %237 : vector<5x5x8xf32>
    %c1_232 = arith.constant 1 : index
    %c1_233 = arith.constant 1 : index
    %c0_234 = arith.constant 0 : index
    %c1_235 = arith.constant 1 : index
    %c0_236 = arith.constant 0 : index
    %239 = vector.load %arg6[%c1_232, %c1_233, %c0_234, %c1_235, %c0_236] : memref<2x2x6x6x8xf32, #tpu.memory_space<vmem>>, vector<1x1x5x5x8xf32>
    %240 = vector.shape_cast %239 : vector<1x1x5x5x8xf32> to vector<5x5x8xf32>
    %c1_237 = arith.constant 1 : index
    %c3_238 = arith.constant 3 : index
    %c0_239 = arith.constant 0 : index
    %c0_240 = arith.constant 0 : index
    %241 = vector.load %arg3[%c1_237, %c3_238, %c0_239, %c0_240] : memref<4x4x3x8xf32, #tpu.memory_space<vmem>>, vector<1x1x1x8xf32>
    %242 = vector.shape_cast %241 : vector<1x1x1x8xf32> to vector<8xf32>
    %243 = vector.shape_cast %242 : vector<8xf32> to vector<1x1x8xf32>
    %244 = vector.broadcast %243 : vector<1x1x8xf32> to vector<5x5x8xf32>
    %245 = arith.mulf %240, %244 : vector<5x5x8xf32>
    %246 = arith.addf %226, %245 : vector<5x5x8xf32>
    %c1_241 = arith.constant 1 : index
    %c3_242 = arith.constant 3 : index
    %c1_243 = arith.constant 1 : index
    %c0_244 = arith.constant 0 : index
    %247 = vector.load %arg3[%c1_241, %c3_242, %c1_243, %c0_244] : memref<4x4x3x8xf32, #tpu.memory_space<vmem>>, vector<1x1x1x8xf32>
    %248 = vector.shape_cast %247 : vector<1x1x1x8xf32> to vector<8xf32>
    %249 = vector.shape_cast %248 : vector<8xf32> to vector<1x1x8xf32>
    %250 = vector.broadcast %249 : vector<1x1x8xf32> to vector<5x5x8xf32>
    %251 = arith.mulf %240, %250 : vector<5x5x8xf32>
    %252 = arith.addf %232, %251 : vector<5x5x8xf32>
    %c1_245 = arith.constant 1 : index
    %c3_246 = arith.constant 3 : index
    %c2_247 = arith.constant 2 : index
    %c0_248 = arith.constant 0 : index
    %253 = vector.load %arg3[%c1_245, %c3_246, %c2_247, %c0_248] : memref<4x4x3x8xf32, #tpu.memory_space<vmem>>, vector<1x1x1x8xf32>
    %254 = vector.shape_cast %253 : vector<1x1x1x8xf32> to vector<8xf32>
    %255 = vector.shape_cast %254 : vector<8xf32> to vector<1x1x8xf32>
    %256 = vector.broadcast %255 : vector<1x1x8xf32> to vector<5x5x8xf32>
    %257 = arith.mulf %240, %256 : vector<5x5x8xf32>
    %258 = arith.addf %238, %257 : vector<5x5x8xf32>
    %c0_249 = arith.constant 0 : index
    %c0_250 = arith.constant 0 : index
    %c1_251 = arith.constant 1 : index
    %c0_252 = arith.constant 0 : index
    %c0_253 = arith.constant 0 : index
    %259 = vector.load %arg6[%c0_249, %c0_250, %c1_251, %c0_252, %c0_253] : memref<2x2x6x6x8xf32, #tpu.memory_space<vmem>>, vector<1x1x5x5x8xf32>
    %260 = vector.shape_cast %259 : vector<1x1x5x5x8xf32> to vector<5x5x8xf32>
    %c2_254 = arith.constant 2 : index
    %c0_255 = arith.constant 0 : index
    %c0_256 = arith.constant 0 : index
    %c0_257 = arith.constant 0 : index
    %261 = vector.load %arg3[%c2_254, %c0_255, %c0_256, %c0_257] : memref<4x4x3x8xf32, #tpu.memory_space<vmem>>, vector<1x1x1x8xf32>
    %262 = vector.shape_cast %261 : vector<1x1x1x8xf32> to vector<8xf32>
    %263 = vector.shape_cast %262 : vector<8xf32> to vector<1x1x8xf32>
    %264 = vector.broadcast %263 : vector<1x1x8xf32> to vector<5x5x8xf32>
    %265 = arith.mulf %260, %264 : vector<5x5x8xf32>
    %266 = arith.addf %246, %265 : vector<5x5x8xf32>
    %c2_258 = arith.constant 2 : index
    %c0_259 = arith.constant 0 : index
    %c1_260 = arith.constant 1 : index
    %c0_261 = arith.constant 0 : index
    %267 = vector.load %arg3[%c2_258, %c0_259, %c1_260, %c0_261] : memref<4x4x3x8xf32, #tpu.memory_space<vmem>>, vector<1x1x1x8xf32>
    %268 = vector.shape_cast %267 : vector<1x1x1x8xf32> to vector<8xf32>
    %269 = vector.shape_cast %268 : vector<8xf32> to vector<1x1x8xf32>
    %270 = vector.broadcast %269 : vector<1x1x8xf32> to vector<5x5x8xf32>
    %271 = arith.mulf %260, %270 : vector<5x5x8xf32>
    %272 = arith.addf %252, %271 : vector<5x5x8xf32>
    %c2_262 = arith.constant 2 : index
    %c0_263 = arith.constant 0 : index
    %c2_264 = arith.constant 2 : index
    %c0_265 = arith.constant 0 : index
    %273 = vector.load %arg3[%c2_262, %c0_263, %c2_264, %c0_265] : memref<4x4x3x8xf32, #tpu.memory_space<vmem>>, vector<1x1x1x8xf32>
    %274 = vector.shape_cast %273 : vector<1x1x1x8xf32> to vector<8xf32>
    %275 = vector.shape_cast %274 : vector<8xf32> to vector<1x1x8xf32>
    %276 = vector.broadcast %275 : vector<1x1x8xf32> to vector<5x5x8xf32>
    %277 = arith.mulf %260, %276 : vector<5x5x8xf32>
    %278 = arith.addf %258, %277 : vector<5x5x8xf32>
    %c0_266 = arith.constant 0 : index
    %c1_267 = arith.constant 1 : index
    %c1_268 = arith.constant 1 : index
    %c0_269 = arith.constant 0 : index
    %c0_270 = arith.constant 0 : index
    %279 = vector.load %arg6[%c0_266, %c1_267, %c1_268, %c0_269, %c0_270] : memref<2x2x6x6x8xf32, #tpu.memory_space<vmem>>, vector<1x1x5x5x8xf32>
    %280 = vector.shape_cast %279 : vector<1x1x5x5x8xf32> to vector<5x5x8xf32>
    %c2_271 = arith.constant 2 : index
    %c1_272 = arith.constant 1 : index
    %c0_273 = arith.constant 0 : index
    %c0_274 = arith.constant 0 : index
    %281 = vector.load %arg3[%c2_271, %c1_272, %c0_273, %c0_274] : memref<4x4x3x8xf32, #tpu.memory_space<vmem>>, vector<1x1x1x8xf32>
    %282 = vector.shape_cast %281 : vector<1x1x1x8xf32> to vector<8xf32>
    %283 = vector.shape_cast %282 : vector<8xf32> to vector<1x1x8xf32>
    %284 = vector.broadcast %283 : vector<1x1x8xf32> to vector<5x5x8xf32>
    %285 = arith.mulf %280, %284 : vector<5x5x8xf32>
    %286 = arith.addf %266, %285 : vector<5x5x8xf32>
    %c2_275 = arith.constant 2 : index
    %c1_276 = arith.constant 1 : index
    %c1_277 = arith.constant 1 : index
    %c0_278 = arith.constant 0 : index
    %287 = vector.load %arg3[%c2_275, %c1_276, %c1_277, %c0_278] : memref<4x4x3x8xf32, #tpu.memory_space<vmem>>, vector<1x1x1x8xf32>
    %288 = vector.shape_cast %287 : vector<1x1x1x8xf32> to vector<8xf32>
    %289 = vector.shape_cast %288 : vector<8xf32> to vector<1x1x8xf32>
    %290 = vector.broadcast %289 : vector<1x1x8xf32> to vector<5x5x8xf32>
    %291 = arith.mulf %280, %290 : vector<5x5x8xf32>
    %292 = arith.addf %272, %291 : vector<5x5x8xf32>
    %c2_279 = arith.constant 2 : index
    %c1_280 = arith.constant 1 : index
    %c2_281 = arith.constant 2 : index
    %c0_282 = arith.constant 0 : index
    %293 = vector.load %arg3[%c2_279, %c1_280, %c2_281, %c0_282] : memref<4x4x3x8xf32, #tpu.memory_space<vmem>>, vector<1x1x1x8xf32>
    %294 = vector.shape_cast %293 : vector<1x1x1x8xf32> to vector<8xf32>
    %295 = vector.shape_cast %294 : vector<8xf32> to vector<1x1x8xf32>
    %296 = vector.broadcast %295 : vector<1x1x8xf32> to vector<5x5x8xf32>
    %297 = arith.mulf %280, %296 : vector<5x5x8xf32>
    %298 = arith.addf %278, %297 : vector<5x5x8xf32>
    %c0_283 = arith.constant 0 : index
    %c0_284 = arith.constant 0 : index
    %c1_285 = arith.constant 1 : index
    %c1_286 = arith.constant 1 : index
    %c0_287 = arith.constant 0 : index
    %299 = vector.load %arg6[%c0_283, %c0_284, %c1_285, %c1_286, %c0_287] : memref<2x2x6x6x8xf32, #tpu.memory_space<vmem>>, vector<1x1x5x5x8xf32>
    %300 = vector.shape_cast %299 : vector<1x1x5x5x8xf32> to vector<5x5x8xf32>
    %c2_288 = arith.constant 2 : index
    %c2_289 = arith.constant 2 : index
    %c0_290 = arith.constant 0 : index
    %c0_291 = arith.constant 0 : index
    %301 = vector.load %arg3[%c2_288, %c2_289, %c0_290, %c0_291] : memref<4x4x3x8xf32, #tpu.memory_space<vmem>>, vector<1x1x1x8xf32>
    %302 = vector.shape_cast %301 : vector<1x1x1x8xf32> to vector<8xf32>
    %303 = vector.shape_cast %302 : vector<8xf32> to vector<1x1x8xf32>
    %304 = vector.broadcast %303 : vector<1x1x8xf32> to vector<5x5x8xf32>
    %305 = arith.mulf %300, %304 : vector<5x5x8xf32>
    %306 = arith.addf %286, %305 : vector<5x5x8xf32>
    %c2_292 = arith.constant 2 : index
    %c2_293 = arith.constant 2 : index
    %c1_294 = arith.constant 1 : index
    %c0_295 = arith.constant 0 : index
    %307 = vector.load %arg3[%c2_292, %c2_293, %c1_294, %c0_295] : memref<4x4x3x8xf32, #tpu.memory_space<vmem>>, vector<1x1x1x8xf32>
    %308 = vector.shape_cast %307 : vector<1x1x1x8xf32> to vector<8xf32>
    %309 = vector.shape_cast %308 : vector<8xf32> to vector<1x1x8xf32>
    %310 = vector.broadcast %309 : vector<1x1x8xf32> to vector<5x5x8xf32>
    %311 = arith.mulf %300, %310 : vector<5x5x8xf32>
    %312 = arith.addf %292, %311 : vector<5x5x8xf32>
    %c2_296 = arith.constant 2 : index
    %c2_297 = arith.constant 2 : index
    %c2_298 = arith.constant 2 : index
    %c0_299 = arith.constant 0 : index
    %313 = vector.load %arg3[%c2_296, %c2_297, %c2_298, %c0_299] : memref<4x4x3x8xf32, #tpu.memory_space<vmem>>, vector<1x1x1x8xf32>
    %314 = vector.shape_cast %313 : vector<1x1x1x8xf32> to vector<8xf32>
    %315 = vector.shape_cast %314 : vector<8xf32> to vector<1x1x8xf32>
    %316 = vector.broadcast %315 : vector<1x1x8xf32> to vector<5x5x8xf32>
    %317 = arith.mulf %300, %316 : vector<5x5x8xf32>
    %318 = arith.addf %298, %317 : vector<5x5x8xf32>
    %c0_300 = arith.constant 0 : index
    %c1_301 = arith.constant 1 : index
    %c1_302 = arith.constant 1 : index
    %c1_303 = arith.constant 1 : index
    %c0_304 = arith.constant 0 : index
    %319 = vector.load %arg6[%c0_300, %c1_301, %c1_302, %c1_303, %c0_304] : memref<2x2x6x6x8xf32, #tpu.memory_space<vmem>>, vector<1x1x5x5x8xf32>
    %320 = vector.shape_cast %319 : vector<1x1x5x5x8xf32> to vector<5x5x8xf32>
    %c2_305 = arith.constant 2 : index
    %c3_306 = arith.constant 3 : index
    %c0_307 = arith.constant 0 : index
    %c0_308 = arith.constant 0 : index
    %321 = vector.load %arg3[%c2_305, %c3_306, %c0_307, %c0_308] : memref<4x4x3x8xf32, #tpu.memory_space<vmem>>, vector<1x1x1x8xf32>
    %322 = vector.shape_cast %321 : vector<1x1x1x8xf32> to vector<8xf32>
    %323 = vector.shape_cast %322 : vector<8xf32> to vector<1x1x8xf32>
    %324 = vector.broadcast %323 : vector<1x1x8xf32> to vector<5x5x8xf32>
    %325 = arith.mulf %320, %324 : vector<5x5x8xf32>
    %326 = arith.addf %306, %325 : vector<5x5x8xf32>
    %c2_309 = arith.constant 2 : index
    %c3_310 = arith.constant 3 : index
    %c1_311 = arith.constant 1 : index
    %c0_312 = arith.constant 0 : index
    %327 = vector.load %arg3[%c2_309, %c3_310, %c1_311, %c0_312] : memref<4x4x3x8xf32, #tpu.memory_space<vmem>>, vector<1x1x1x8xf32>
    %328 = vector.shape_cast %327 : vector<1x1x1x8xf32> to vector<8xf32>
    %329 = vector.shape_cast %328 : vector<8xf32> to vector<1x1x8xf32>
    %330 = vector.broadcast %329 : vector<1x1x8xf32> to vector<5x5x8xf32>
    %331 = arith.mulf %320, %330 : vector<5x5x8xf32>
    %332 = arith.addf %312, %331 : vector<5x5x8xf32>
    %c2_313 = arith.constant 2 : index
    %c3_314 = arith.constant 3 : index
    %c2_315 = arith.constant 2 : index
    %c0_316 = arith.constant 0 : index
    %333 = vector.load %arg3[%c2_313, %c3_314, %c2_315, %c0_316] : memref<4x4x3x8xf32, #tpu.memory_space<vmem>>, vector<1x1x1x8xf32>
    %334 = vector.shape_cast %333 : vector<1x1x1x8xf32> to vector<8xf32>
    %335 = vector.shape_cast %334 : vector<8xf32> to vector<1x1x8xf32>
    %336 = vector.broadcast %335 : vector<1x1x8xf32> to vector<5x5x8xf32>
    %337 = arith.mulf %320, %336 : vector<5x5x8xf32>
    %338 = arith.addf %318, %337 : vector<5x5x8xf32>
    %c1_317 = arith.constant 1 : index
    %c0_318 = arith.constant 0 : index
    %c1_319 = arith.constant 1 : index
    %c0_320 = arith.constant 0 : index
    %c0_321 = arith.constant 0 : index
    %339 = vector.load %arg6[%c1_317, %c0_318, %c1_319, %c0_320, %c0_321] : memref<2x2x6x6x8xf32, #tpu.memory_space<vmem>>, vector<1x1x5x5x8xf32>
    %340 = vector.shape_cast %339 : vector<1x1x5x5x8xf32> to vector<5x5x8xf32>
    %c3_322 = arith.constant 3 : index
    %c0_323 = arith.constant 0 : index
    %c0_324 = arith.constant 0 : index
    %c0_325 = arith.constant 0 : index
    %341 = vector.load %arg3[%c3_322, %c0_323, %c0_324, %c0_325] : memref<4x4x3x8xf32, #tpu.memory_space<vmem>>, vector<1x1x1x8xf32>
    %342 = vector.shape_cast %341 : vector<1x1x1x8xf32> to vector<8xf32>
    %343 = vector.shape_cast %342 : vector<8xf32> to vector<1x1x8xf32>
    %344 = vector.broadcast %343 : vector<1x1x8xf32> to vector<5x5x8xf32>
    %345 = arith.mulf %340, %344 : vector<5x5x8xf32>
    %346 = arith.addf %326, %345 : vector<5x5x8xf32>
    %c3_326 = arith.constant 3 : index
    %c0_327 = arith.constant 0 : index
    %c1_328 = arith.constant 1 : index
    %c0_329 = arith.constant 0 : index
    %347 = vector.load %arg3[%c3_326, %c0_327, %c1_328, %c0_329] : memref<4x4x3x8xf32, #tpu.memory_space<vmem>>, vector<1x1x1x8xf32>
    %348 = vector.shape_cast %347 : vector<1x1x1x8xf32> to vector<8xf32>
    %349 = vector.shape_cast %348 : vector<8xf32> to vector<1x1x8xf32>
    %350 = vector.broadcast %349 : vector<1x1x8xf32> to vector<5x5x8xf32>
    %351 = arith.mulf %340, %350 : vector<5x5x8xf32>
    %352 = arith.addf %332, %351 : vector<5x5x8xf32>
    %c3_330 = arith.constant 3 : index
    %c0_331 = arith.constant 0 : index
    %c2_332 = arith.constant 2 : index
    %c0_333 = arith.constant 0 : index
    %353 = vector.load %arg3[%c3_330, %c0_331, %c2_332, %c0_333] : memref<4x4x3x8xf32, #tpu.memory_space<vmem>>, vector<1x1x1x8xf32>
    %354 = vector.shape_cast %353 : vector<1x1x1x8xf32> to vector<8xf32>
    %355 = vector.shape_cast %354 : vector<8xf32> to vector<1x1x8xf32>
    %356 = vector.broadcast %355 : vector<1x1x8xf32> to vector<5x5x8xf32>
    %357 = arith.mulf %340, %356 : vector<5x5x8xf32>
    %358 = arith.addf %338, %357 : vector<5x5x8xf32>
    %c1_334 = arith.constant 1 : index
    %c1_335 = arith.constant 1 : index
    %c1_336 = arith.constant 1 : index
    %c0_337 = arith.constant 0 : index
    %c0_338 = arith.constant 0 : index
    %359 = vector.load %arg6[%c1_334, %c1_335, %c1_336, %c0_337, %c0_338] : memref<2x2x6x6x8xf32, #tpu.memory_space<vmem>>, vector<1x1x5x5x8xf32>
    %360 = vector.shape_cast %359 : vector<1x1x5x5x8xf32> to vector<5x5x8xf32>
    %c3_339 = arith.constant 3 : index
    %c1_340 = arith.constant 1 : index
    %c0_341 = arith.constant 0 : index
    %c0_342 = arith.constant 0 : index
    %361 = vector.load %arg3[%c3_339, %c1_340, %c0_341, %c0_342] : memref<4x4x3x8xf32, #tpu.memory_space<vmem>>, vector<1x1x1x8xf32>
    %362 = vector.shape_cast %361 : vector<1x1x1x8xf32> to vector<8xf32>
    %363 = vector.shape_cast %362 : vector<8xf32> to vector<1x1x8xf32>
    %364 = vector.broadcast %363 : vector<1x1x8xf32> to vector<5x5x8xf32>
    %365 = arith.mulf %360, %364 : vector<5x5x8xf32>
    %366 = arith.addf %346, %365 : vector<5x5x8xf32>
    %c3_343 = arith.constant 3 : index
    %c1_344 = arith.constant 1 : index
    %c1_345 = arith.constant 1 : index
    %c0_346 = arith.constant 0 : index
    %367 = vector.load %arg3[%c3_343, %c1_344, %c1_345, %c0_346] : memref<4x4x3x8xf32, #tpu.memory_space<vmem>>, vector<1x1x1x8xf32>
    %368 = vector.shape_cast %367 : vector<1x1x1x8xf32> to vector<8xf32>
    %369 = vector.shape_cast %368 : vector<8xf32> to vector<1x1x8xf32>
    %370 = vector.broadcast %369 : vector<1x1x8xf32> to vector<5x5x8xf32>
    %371 = arith.mulf %360, %370 : vector<5x5x8xf32>
    %372 = arith.addf %352, %371 : vector<5x5x8xf32>
    %c3_347 = arith.constant 3 : index
    %c1_348 = arith.constant 1 : index
    %c2_349 = arith.constant 2 : index
    %c0_350 = arith.constant 0 : index
    %373 = vector.load %arg3[%c3_347, %c1_348, %c2_349, %c0_350] : memref<4x4x3x8xf32, #tpu.memory_space<vmem>>, vector<1x1x1x8xf32>
    %374 = vector.shape_cast %373 : vector<1x1x1x8xf32> to vector<8xf32>
    %375 = vector.shape_cast %374 : vector<8xf32> to vector<1x1x8xf32>
    %376 = vector.broadcast %375 : vector<1x1x8xf32> to vector<5x5x8xf32>
    %377 = arith.mulf %360, %376 : vector<5x5x8xf32>
    %378 = arith.addf %358, %377 : vector<5x5x8xf32>
    %c1_351 = arith.constant 1 : index
    %c0_352 = arith.constant 0 : index
    %c1_353 = arith.constant 1 : index
    %c1_354 = arith.constant 1 : index
    %c0_355 = arith.constant 0 : index
    %379 = vector.load %arg6[%c1_351, %c0_352, %c1_353, %c1_354, %c0_355] : memref<2x2x6x6x8xf32, #tpu.memory_space<vmem>>, vector<1x1x5x5x8xf32>
    %380 = vector.shape_cast %379 : vector<1x1x5x5x8xf32> to vector<5x5x8xf32>
    %c3_356 = arith.constant 3 : index
    %c2_357 = arith.constant 2 : index
    %c0_358 = arith.constant 0 : index
    %c0_359 = arith.constant 0 : index
    %381 = vector.load %arg3[%c3_356, %c2_357, %c0_358, %c0_359] : memref<4x4x3x8xf32, #tpu.memory_space<vmem>>, vector<1x1x1x8xf32>
    %382 = vector.shape_cast %381 : vector<1x1x1x8xf32> to vector<8xf32>
    %383 = vector.shape_cast %382 : vector<8xf32> to vector<1x1x8xf32>
    %384 = vector.broadcast %383 : vector<1x1x8xf32> to vector<5x5x8xf32>
    %385 = arith.mulf %380, %384 : vector<5x5x8xf32>
    %386 = arith.addf %366, %385 : vector<5x5x8xf32>
    %c3_360 = arith.constant 3 : index
    %c2_361 = arith.constant 2 : index
    %c1_362 = arith.constant 1 : index
    %c0_363 = arith.constant 0 : index
    %387 = vector.load %arg3[%c3_360, %c2_361, %c1_362, %c0_363] : memref<4x4x3x8xf32, #tpu.memory_space<vmem>>, vector<1x1x1x8xf32>
    %388 = vector.shape_cast %387 : vector<1x1x1x8xf32> to vector<8xf32>
    %389 = vector.shape_cast %388 : vector<8xf32> to vector<1x1x8xf32>
    %390 = vector.broadcast %389 : vector<1x1x8xf32> to vector<5x5x8xf32>
    %391 = arith.mulf %380, %390 : vector<5x5x8xf32>
    %392 = arith.addf %372, %391 : vector<5x5x8xf32>
    %c3_364 = arith.constant 3 : index
    %c2_365 = arith.constant 2 : index
    %c2_366 = arith.constant 2 : index
    %c0_367 = arith.constant 0 : index
    %393 = vector.load %arg3[%c3_364, %c2_365, %c2_366, %c0_367] : memref<4x4x3x8xf32, #tpu.memory_space<vmem>>, vector<1x1x1x8xf32>
    %394 = vector.shape_cast %393 : vector<1x1x1x8xf32> to vector<8xf32>
    %395 = vector.shape_cast %394 : vector<8xf32> to vector<1x1x8xf32>
    %396 = vector.broadcast %395 : vector<1x1x8xf32> to vector<5x5x8xf32>
    %397 = arith.mulf %380, %396 : vector<5x5x8xf32>
    %398 = arith.addf %378, %397 : vector<5x5x8xf32>
    %c1_368 = arith.constant 1 : index
    %c1_369 = arith.constant 1 : index
    %c1_370 = arith.constant 1 : index
    %c1_371 = arith.constant 1 : index
    %c0_372 = arith.constant 0 : index
    %399 = vector.load %arg6[%c1_368, %c1_369, %c1_370, %c1_371, %c0_372] : memref<2x2x6x6x8xf32, #tpu.memory_space<vmem>>, vector<1x1x5x5x8xf32>
    %400 = vector.shape_cast %399 : vector<1x1x5x5x8xf32> to vector<5x5x8xf32>
    %c3_373 = arith.constant 3 : index
    %c3_374 = arith.constant 3 : index
    %c0_375 = arith.constant 0 : index
    %c0_376 = arith.constant 0 : index
    %401 = vector.load %arg3[%c3_373, %c3_374, %c0_375, %c0_376] : memref<4x4x3x8xf32, #tpu.memory_space<vmem>>, vector<1x1x1x8xf32>
    %402 = vector.shape_cast %401 : vector<1x1x1x8xf32> to vector<8xf32>
    %403 = vector.shape_cast %402 : vector<8xf32> to vector<1x1x8xf32>
    %404 = vector.broadcast %403 : vector<1x1x8xf32> to vector<5x5x8xf32>
    %405 = arith.mulf %400, %404 : vector<5x5x8xf32>
    %406 = arith.addf %386, %405 : vector<5x5x8xf32>
    %c3_377 = arith.constant 3 : index
    %c3_378 = arith.constant 3 : index
    %c1_379 = arith.constant 1 : index
    %c0_380 = arith.constant 0 : index
    %407 = vector.load %arg3[%c3_377, %c3_378, %c1_379, %c0_380] : memref<4x4x3x8xf32, #tpu.memory_space<vmem>>, vector<1x1x1x8xf32>
    %408 = vector.shape_cast %407 : vector<1x1x1x8xf32> to vector<8xf32>
    %409 = vector.shape_cast %408 : vector<8xf32> to vector<1x1x8xf32>
    %410 = vector.broadcast %409 : vector<1x1x8xf32> to vector<5x5x8xf32>
    %411 = arith.mulf %400, %410 : vector<5x5x8xf32>
    %412 = arith.addf %392, %411 : vector<5x5x8xf32>
    %c3_381 = arith.constant 3 : index
    %c3_382 = arith.constant 3 : index
    %c2_383 = arith.constant 2 : index
    %c0_384 = arith.constant 0 : index
    %413 = vector.load %arg3[%c3_381, %c3_382, %c2_383, %c0_384] : memref<4x4x3x8xf32, #tpu.memory_space<vmem>>, vector<1x1x1x8xf32>
    %414 = vector.shape_cast %413 : vector<1x1x1x8xf32> to vector<8xf32>
    %415 = vector.shape_cast %414 : vector<8xf32> to vector<1x1x8xf32>
    %416 = vector.broadcast %415 : vector<1x1x8xf32> to vector<5x5x8xf32>
    %417 = arith.mulf %400, %416 : vector<5x5x8xf32>
    %418 = arith.addf %398, %417 : vector<5x5x8xf32>
    %cst_385 = arith.constant dense<0.000000e+00> : vector<5x5xf32>
    %419 = vector.multi_reduction <add>, %406, %cst_385 [2] : vector<5x5x8xf32> to vector<5x5xf32>
    %c0_386 = arith.constant 0 : index
    %420 = memref.load %arg4[%c0_386] : memref<3xf32, #tpu.memory_space<smem>>
    %421 = vector.broadcast %420 : f32 to vector<5x5xf32>
    %422 = arith.addf %419, %421 : vector<5x5xf32>
    %c0_387 = arith.constant 0 : index
    %c0_388 = arith.constant 0 : index
    %c0_389 = arith.constant 0 : index
    %c0_390 = arith.constant 0 : index
    %423 = vector.load %arg5[%c0_387, %c0_388, %c0_389, %c0_390] : memref<1x3x5x5xf32, #tpu.memory_space<vmem>>, vector<1x1x5x5xf32>
    %424 = vector.shape_cast %423 : vector<1x1x5x5xf32> to vector<5x5xf32>
    %425 = vector.shape_cast %422 : vector<5x5xf32> to vector<1x1x5x5xf32>
    tpu.vector_store %arg5[%c0_387, %c0_388, %c0_389, %c0_390], %425 {strides = array<i32>} : memref<1x3x5x5xf32, #tpu.memory_space<vmem>>, vector<1x1x5x5xf32>,
    %cst_391 = arith.constant dense<0.000000e+00> : vector<5x5xf32>
    %426 = vector.multi_reduction <add>, %412, %cst_391 [2] : vector<5x5x8xf32> to vector<5x5xf32>
    %c1_392 = arith.constant 1 : index
    %427 = memref.load %arg4[%c1_392] : memref<3xf32, #tpu.memory_space<smem>>
    %428 = vector.broadcast %427 : f32 to vector<5x5xf32>
    %429 = arith.addf %426, %428 : vector<5x5xf32>
    %c0_393 = arith.constant 0 : index
    %c1_394 = arith.constant 1 : index
    %c0_395 = arith.constant 0 : index
    %c0_396 = arith.constant 0 : index
    %430 = vector.load %arg5[%c0_393, %c1_394, %c0_395, %c0_396] : memref<1x3x5x5xf32, #tpu.memory_space<vmem>>, vector<1x1x5x5xf32>
    %431 = vector.shape_cast %430 : vector<1x1x5x5xf32> to vector<5x5xf32>
    %432 = vector.shape_cast %429 : vector<5x5xf32> to vector<1x1x5x5xf32>
    tpu.vector_store %arg5[%c0_393, %c1_394, %c0_395, %c0_396], %432 {strides = array<i32>} : memref<1x3x5x5xf32, #tpu.memory_space<vmem>>, vector<1x1x5x5xf32>,
    %cst_397 = arith.constant dense<0.000000e+00> : vector<5x5xf32>
    %433 = vector.multi_reduction <add>, %418, %cst_397 [2] : vector<5x5x8xf32> to vector<5x5xf32>
    %c2_398 = arith.constant 2 : index
    %434 = memref.load %arg4[%c2_398] : memref<3xf32, #tpu.memory_space<smem>>
    %435 = vector.broadcast %434 : f32 to vector<5x5xf32>
    %436 = arith.addf %433, %435 : vector<5x5xf32>
    %c0_399 = arith.constant 0 : index
    %c2_400 = arith.constant 2 : index
    %c0_401 = arith.constant 0 : index
    %c0_402 = arith.constant 0 : index
    %437 = vector.load %arg5[%c0_399, %c2_400, %c0_401, %c0_402] : memref<1x3x5x5xf32, #tpu.memory_space<vmem>>, vector<1x1x5x5xf32>
    %438 = vector.shape_cast %437 : vector<1x1x5x5xf32> to vector<5x5xf32>
    %439 = vector.shape_cast %436 : vector<5x5xf32> to vector<1x1x5x5xf32>
    tpu.vector_store %arg5[%c0_399, %c2_400, %c0_401, %c0_402], %439 {strides = array<i32>} : memref<1x3x5x5xf32, #tpu.memory_space<vmem>>, vector<1x1x5x5xf32>,
    return
  }
  func.func @transform_0(%arg0: i32) -> (i32, i32, i32) {
    %c0_i32 = arith.constant 0 : i32
    %c0_i32_0 = arith.constant 0 : i32
    %c0_i32_1 = arith.constant 0 : i32
    return %arg0, %c0_i32, %c0_i32_0 : i32, i32, i32
  }
  func.func @transform_1(%arg0: i32) -> (i32, i32) {
    %c0_i32 = arith.constant 0 : i32
    %c0_i32_0 = arith.constant 0 : i32
    %c0_i32_1 = arith.constant 0 : i32
    return %c0_i32, %c0_i32_0 : i32, i32
  }
  func.func @transform_2(%arg0: i32) -> (i32, i32, i32, i32) {
    %c0_i32 = arith.constant 0 : i32
    %c0_i32_0 = arith.constant 0 : i32
    %c0_i32_1 = arith.constant 0 : i32
    %c0_i32_2 = arith.constant 0 : i32
    %c0_i32_3 = arith.constant 0 : i32
    return %c0_i32, %c0_i32_0, %c0_i32_1, %c0_i32_2 : i32, i32, i32, i32
  }
  func.func @transform_3(%arg0: i32) -> i32 {
    %c0_i32 = arith.constant 0 : i32
    %c0_i32_0 = arith.constant 0 : i32
    return %c0_i32 : i32
  }
  func.func @transform_4(%arg0: i32) -> (i32, i32, i32, i32) {
    %c0_i32 = arith.constant 0 : i32
    %c0_i32_0 = arith.constant 0 : i32
    %c0_i32_1 = arith.constant 0 : i32
    %c0_i32_2 = arith.constant 0 : i32
    return %arg0, %c0_i32, %c0_i32_0, %c0_i32_1 : i32, i32, i32, i32
  }
}

</mosaic_0001>

<llo_original>
// kernel: poly_generator_c3.1
$region0: #{poly_generator_c3.1}
  #allocation0 [shape = 'u32[]', space=smem, size = 0x4, offset = 0x4, fixed_abs, tag = 'smem constant byte address 0x4 - core index']
  #allocation1 [shape = 'u32[144,128]{1,0:T(1,128)}', space=vmem, size = 0x12000, scoped, tag = 'internal scratch']
  #allocation2 [shape = 'f32[2,2,6,6,8]{4,3,2,1,0:T(8,128)}', space=vmem, size = 0x18000, scoped, tag = 'scratch operand']
  %s0 = inlined_call_operand.vmem [shape: bf16[2,81,64], index: 0, kind: input, shape index: {}]
  %s1 = inlined_call_operand.vmem [shape: bf16[64,24], index: 1, kind: input, shape index: {}]
  %s2 = inlined_call_operand.vmem [shape: f32[4,4,3,8], index: 2, kind: input, shape index: {}]
  %s3 = inlined_call_operand.vmem [shape: f32[3], index: 3, kind: input, shape index: {}]
  %s4 = inlined_call_operand.vmem [shape: f32[2,3,5,5], index: 4, kind: output, shape index: {}]
  %s5 = sld [smem:[#allocation0]]
  $region53: #{poly_generator_c3.1} parent=0
    _
  %s7 = ssub.s32 1, %s5
  %s8 = scalar_select 0, %s7, %s5
  $region1: #{poly_generator_c3.1} parent=0
    #allocation3 [shape = 'u8[512]{0}', space=smem, size = 0x200, scoped, tag = 'input window, operand 3, single buffered']
    #allocation4 [shape = 's32[2]{0}', space=sflag, size = 0x8, scoped, tag = 'scoped memory for poly_generator_c3.1']
    %9 = vsyncpa [#allocation4], 0
    loop: start=0, step=1, limit=4
    $region2: #{poly_generator_c3.1} parent=1 // loop_pre_header
      _
    $region3: #{poly_generator_c3.1} parent=1 // loop_header
      %s11 = sphi 0, %s15
      %p12 = scmp.ge.s32.totalorder %s11, 4
      %s21 = sphi 0, %s23
      %s24 = sphi 0, %s21
      %s25 = sphi 0, %s24
      %s41 = sphi 0, %s25
      %s45 = sphi 0, %s45
      %s47 = sphi 0, %s45
      %s48 = sphi 0, %s47
      %s62 = sphi 0, %s48
      %s66 = sphi 0, %s66
      %s68 = sphi 0, %s66
      %s69 = sphi 0, %s68
      %s83 = sphi 0, %s69
      %s87 = sphi 0, %s87
      %s89 = sphi 0, %s87
      %s90 = sphi 0, %s89
      %s104 = sphi 0, %s90
      %s110 = sphi 0, %s112
      %s113 = sphi 0, %s110
      %s114 = sphi 0, %s113
      %s130 = sphi 0, %s114
    $region4: #{poly_generator_c3.1} parent=1 // loop_header_branch
      %14 = sbr.rel (%p12) target = $region8
    $region5: #{poly_generator_c3.1} parent=1 // loop_body
      %s16 = ssub.s32 %s11, 1
      %s17 = ssub.s32 %s11, 2
      %s18 = sadd.s32 %s11, 1
      %s19 = ssub.s32 %s11, %s18
      %p20 = scmp.eq.s32.totalorder %s19, 0
      %s22 = sadd.s32 %s21, 1
      %s23 = scalar_select %p20, %s21, %s22
      %p26 = pneg %p20
      %p27 = scmp.eq.s32.totalorder %s11, 1
      %p28 = por %p26, %p27
      %p29 = scmp.ne.s32.totalorder %s21, %s24
      %p30 = scmp.eq.s32.totalorder %s11, 0
      %p31 = por %p29, %p30
      %p32 = scmp.ne.s32.totalorder %s21, %s24
      %p33 = scmp.eq.s32.totalorder %s16, 1
      %p34 = por %p32, %p33
      %p35 = scmp.ne.s32.totalorder %s24, %s25
      %p36 = scmp.eq.s32.totalorder %s16, 0
      %p37 = por %p35, %p36
      %p38 = scmp.ne.s32.totalorder %s24, %s25
      %p39 = scmp.eq.s32.totalorder %s17, 1
      %p40 = por %p38, %p39
      %p42 = scmp.ne.s32.totalorder %s25, %s41
      %p43 = scmp.eq.s32.totalorder %s17, 0
      %p44 = por %p42, %p43
      %s46 = sadd.s32 %s45, 1
      %p49 = scmp.eq.s32.totalorder %s11, 1
      %p50 = scmp.ne.s32.totalorder %s45, %s47
      %p51 = scmp.eq.s32.totalorder %s11, 0
      %p52 = por %p50, %p51
      %p53 = scmp.ne.s32.totalorder %s45, %s47
      %p54 = scmp.eq.s32.totalorder %s16, 1
      %p55 = por %p53, %p54
      %p56 = scmp.ne.s32.totalorder %s47, %s48
      %p57 = scmp.eq.s32.totalorder %s16, 0
      %p58 = por %p56, %p57
      %p59 = scmp.ne.s32.totalorder %s47, %s48
      %p60 = scmp.eq.s32.totalorder %s17, 1
      %p61 = por %p59, %p60
      %p63 = scmp.ne.s32.totalorder %s48, %s62
      %p64 = scmp.eq.s32.totalorder %s17, 0
      %p65 = por %p63, %p64
      %s67 = sadd.s32 %s66, 1
      %p70 = scmp.eq.s32.totalorder %s11, 1
      %p71 = scmp.ne.s32.totalorder %s66, %s68
      %p72 = scmp.eq.s32.totalorder %s11, 0
      %p73 = por %p71, %p72
      %p74 = scmp.ne.s32.totalorder %s66, %s68
      %p75 = scmp.eq.s32.totalorder %s16, 1
      %p76 = por %p74, %p75
      %p77 = scmp.ne.s32.totalorder %s68, %s69
      %p78 = scmp.eq.s32.totalorder %s16, 0
      %p79 = por %p77, %p78
      %p80 = scmp.ne.s32.totalorder %s68, %s69
      %p81 = scmp.eq.s32.totalorder %s17, 1
      %p82 = por %p80, %p81
      %p84 = scmp.ne.s32.totalorder %s69, %s83
      %p85 = scmp.eq.s32.totalorder %s17, 0
      %p86 = por %p84, %p85
      %s88 = sadd.s32 %s87, 1
      %p91 = scmp.eq.s32.totalorder %s11, 1
      %p92 = scmp.ne.s32.totalorder %s87, %s89
      %p93 = scmp.eq.s32.totalorder %s11, 0
      %p94 = por %p92, %p93
      %p95 = scmp.ne.s32.totalorder %s87, %s89
      %p96 = scmp.eq.s32.totalorder %s16, 1
      %p97 = por %p95, %p96
      %p98 = scmp.ne.s32.totalorder %s89, %s90
      %p99 = scmp.eq.s32.totalorder %s16, 0
      %p100 = por %p98, %p99
      %p101 = scmp.ne.s32.totalorder %s89, %s90
      %p102 = scmp.eq.s32.totalorder %s17, 1
      %p103 = por %p101, %p102
      %p105 = scmp.ne.s32.totalorder %s90, %s104
      %p106 = scmp.eq.s32.totalorder %s17, 0
      %p107 = por %p105, %p106
      %s108 = ssub.s32 %s11, %s18
      %p109 = scmp.eq.s32.totalorder %s108, 0
      %s111 = sadd.s32 %s110, 1
      %s112 = scalar_select %p109, %s110, %s111
      %p115 = pneg %p109
      %p116 = scmp.eq.s32.totalorder %s11, 1
      %p117 = por %p115, %p116
      %p118 = scmp.ne.s32.totalorder %s110, %s113
      %p119 = scmp.eq.s32.totalorder %s11, 0
      %p120 = por %p118, %p119
      %p121 = scmp.ne.s32.totalorder %s110, %s113
      %p122 = scmp.eq.s32.totalorder %s16, 1
      %p123 = por %p121, %p122
      %p124 = scmp.ne.s32.totalorder %s113, %s114
      %p125 = scmp.eq.s32.totalorder %s16, 0
      %p126 = por %p124, %p125
      %p127 = scmp.ne.s32.totalorder %s113, %s114
      %p128 = scmp.eq.s32.totalorder %s17, 1
      %p129 = por %p127, %p128
      %p131 = scmp.ne.s32.totalorder %s114, %s130
      %p132 = scmp.eq.s32.totalorder %s17, 0
      %p133 = por %p131, %p132
      %p134 = scmp.le.s32.totalorder 1, %s11
      %p135 = scmp.lt.s32.totalorder %s11, 3
      %p136 = pnand %p134, %p135
      %p137 = pneg %p136
      // Predicated region
      $region9: #{poly_generator_c3.1} parent=5 // pred_check
        _
      $region10: #{poly_generator_c3.1} parent=5 // pred_check_branch
        %139 = sbr.rel (%p136) target = $region12
      $region11: #{poly_generator_c3.1} parent=5 // pred_region
        %s140 = ssub.s32 %s11, 1
        // Predicated region
        $region13: #{poly_generator_c3.1} parent=11 // pred_check
          %p141 = pneg %p58
        $region14: #{poly_generator_c3.1} parent=11 // pred_check_branch
          %143 = sbr.rel (%p141) target = $region16
        $region15: #{poly_generator_c3.1} parent=11 // pred_region
          _
        $region16: #{poly_generator_c3.1} parent=11 // pred_fallthru
          _
        // Predicated region
        $region17: #{poly_generator_c3.1} parent=11 // pred_check
          %p144 = pneg %p79
        $region18: #{poly_generator_c3.1} parent=11 // pred_check_branch
          %146 = sbr.rel (%p144) target = $region20
        $region19: #{poly_generator_c3.1} parent=11 // pred_region
          _
        $region20: #{poly_generator_c3.1} parent=11 // pred_fallthru
          _
        // Predicated region
        $region21: #{poly_generator_c3.1} parent=11 // pred_check
          %p147 = pneg %p100
        $region22: #{poly_generator_c3.1} parent=11 // pred_check_branch
          %149 = sbr.rel (%p147) target = $region24
        $region23: #{poly_generator_c3.1} parent=11 // pred_region
          %s151 = ssub.s32 16, 16
          %152 = vsyncadd [#allocation4], %s151
          %s154 = sshll.u32 %s3, 4
          %s155 = int_to_ptr.vmem [resolvable:$true] %s154
          %157 = dma.vmem_to_smem %s155, 16, [#allocation3], [#allocation4]
        $region24: #{poly_generator_c3.1} parent=11 // pred_fallthru
          _
      $region12: #{poly_generator_c3.1} parent=5 // pred_fallthru
        _
      %p158 = scmp.lt.s32.totalorder %s11, 2
      // Predicated region
      $region25: #{poly_generator_c3.1} parent=5 // pred_check
        %p159 = pneg %p158
      $region26: #{poly_generator_c3.1} parent=5 // pred_check_branch
        %161 = sbr.rel (%p159) target = $region28
      $region27: #{poly_generator_c3.1} parent=5 // pred_region
        // Predicated region
        $region29: #{poly_generator_c3.1} parent=27 // pred_check
          %p162 = pneg %p31
        $region30: #{poly_generator_c3.1} parent=27 // pred_check_branch
          %164 = sbr.rel (%p162) target = $region32
        $region31: #{poly_generator_c3.1} parent=27 // pred_region
          %p165 = scmp.lt.s32.totalorder %s11, 1
          %s166 = scalar_select %p165, %s11, 1
          %s167 = smul.addr %s166, 11
          %s168 = smul.addr %s167, 4
          %s169 = scalar_lea.vmem %s0, %s168
        $region32: #{poly_generator_c3.1} parent=27 // pred_fallthru
          _
      $region28: #{poly_generator_c3.1} parent=5 // pred_fallthru
        _
      %p170 = scmp.le.s32.totalorder 1, %s11
      %p171 = scmp.lt.s32.totalorder %s11, 3
      %p172 = pnand %p170, %p171
      %p173 = pneg %p172
      // Predicated region
      $region33: #{poly_generator_c3.1} parent=5 // pred_check
        _
      $region34: #{poly_generator_c3.1} parent=5 // pred_check_branch
        %175 = sbr.rel (%p172) target = $region36
      $region35: #{poly_generator_c3.1} parent=5 // pred_region
        %s176 = ssub.s32 %s11, 1
        // Predicated region
        $region37: #{poly_generator_c3.1} parent=35 // pred_check
          %p177 = pneg %p100
        $region38: #{poly_generator_c3.1} parent=35 // pred_check_branch
          %179 = sbr.rel (%p177) target = $region40
        $region39: #{poly_generator_c3.1} parent=35 // pred_region
          %180 = dma.done [#allocation4], 16
        $region40: #{poly_generator_c3.1} parent=35 // pred_fallthru
          _
        %181 = sfence
        %p182 = scmp.lt.s32.totalorder %s16, 1
        %s183 = scalar_select %p182, %s16, 1
        %s184 = smul.addr %s183, 11
        %s185 = smul.addr %s184, 4
        %s186 = scalar_lea.vmem %s0, %s185
        %p187 = pneg %p37
        %p188 = pneg %p34
        %p189 = pneg %p58
        %p190 = pneg %p55
        %p191 = pneg %p79
        %p192 = pneg %p76
        %p193 = pneg %p100
        %p194 = pneg %p97
        %p195 = pneg %p126
        %p196 = pneg %p123
        %p197 = scmp.lt.s32.totalorder %s16, 1
        %s198 = scalar_select %p197, %s16, 1
        %s199 = smul.addr %s198, 3
        %s200 = smul.addr %s199, 8
        %s201 = scalar_lea.vmem %s4, %s200
        %p202 = scmp.lt.s32.totalorder %s16, 1
        %s203 = scalar_select %p202, %s16, 1
        %s204 = smul.addr %s203, 11
        %s205 = smul.addr %s204, 4
        %s206 = scalar_lea.vmem %s0, %s205
        %p207 = scmp.lt.s32.totalorder %s16, 1
        %s208 = scalar_select %p207, %s16, 1
        %s209 = smul.addr %s208, 3
        %s210 = smul.addr %s209, 8
        %s211 = scalar_lea.vmem %s4, %s210
        %v213 = vld [vmem:[%s206] sm:$0xf]
        %v214 = vld [vmem:[%s206 + $0x4] sm:$0xf]
        %v215 = vld [vmem:[%s206 + $0x8] sm:$0xf]
        %v216 = vld [vmem:[%s206 + $0xc] sm:$0xf]
        %v217 = vld [vmem:[%s206 + $0x10] sm:$0xf]
        %v218 = vld [vmem:[%s206 + $0x14] sm:$0xf]
        %v219 = vld [vmem:[%s206 + $0x18] sm:$0xf]
        %v220 = vld [vmem:[%s206 + $0x1c] sm:$0xf]
        %v221 = vld [vmem:[%s206 + $0x20] sm:$0xf]
        %v222 = vld [vmem:[%s206 + $0x24] sm:$0xf]
        %v223 = vld [vmem:[%s206 + $0x28] sm:$0x1]
        %v224 = vld [vmem:[%s1] sm:$0xf]
        %v225 = vld [vmem:[%s1 + $0x4] sm:$0xf]
        %v226 = vld [vmem:[%s1 + $0x8] sm:$0xf]
        %v227 = vld [vmem:[%s1 + $0xc] sm:$0xf]
        %v228 = vld [vmem:[%s1 + $0x10] sm:$0xf]
        %v229 = vld [vmem:[%s1 + $0x14] sm:$0xf]
        %v230 = vld [vmem:[%s1 + $0x18] sm:$0xf]
        %v231 = vld [vmem:[%s1 + $0x1c] sm:$0xf]
        %v243 = vunpack.c.l.b16 %v213
        %v244 = vunpack.c.l.b16 %v214
        %v245 = vunpack.c.l.b16 %v215
        %v246 = vunpack.c.l.b16 %v216
        %v247 = vunpack.c.l.b16 %v217
        %v248 = vunpack.c.l.b16 %v218
        %v249 = vunpack.c.l.b16 %v219
        %v250 = vunpack.c.l.b16 %v220
        %v251 = vunpack.c.l.b16 %v221
        %v252 = vunpack.c.l.b16 %v222
        %v253 = vunpack.c.l.b16 %v223
        %v254 = vpack.c.b16 %v244, %v243
        %v255 = vpack.c.b16 %v246, %v245
        %v256 = vpack.c.b16 %v248, %v247
        %v257 = vpack.c.b16 %v250, %v249
        %v258 = vpack.c.b16 %v252, %v251
        %v259 = vpack.c.b16 %v253, %v253
        %v268 = vunpack.c.l.b16 %v224
        %v269 = vunpack.c.l.b16 %v225
        %v270 = vunpack.c.l.b16 %v226
        %v271 = vunpack.c.l.b16 %v227
        %v272 = vunpack.c.l.b16 %v228
        %v273 = vunpack.c.l.b16 %v229
        %v274 = vunpack.c.l.b16 %v230
        %v275 = vunpack.c.l.b16 %v231
        %v276 = vpack.c.b16 %v269, %v268
        %v277 = vpack.c.b16 %v271, %v270
        %v278 = vpack.c.b16 %v273, %v272
        %v279 = vpack.c.b16 %v275, %v274
        %vm284 = vcmask 523264
        %v286 = vsel %vm284, %v254, 0
        %v289 = vsel %vm284, %v255, 0
        %v292 = vsel %vm284, %v256, 0
        %v295 = vsel %vm284, %v257, 0
        %v298 = vsel %vm284, %v258, 0
        %v301 = vsel %vm284, %v259, 0
        %303 = vmatprep.subr.bf16.mxu0 0
        %304 = vmatpush1.bf16.msra.mxu0 %v276
        %305 = vmatprep.subr.bf16.mxu0 0
        %306 = vmatpush1.bf16.msra.mxu0 %v277
        %307 = vmatprep.subr.bf16.mxu0 0
        %308 = vmatpush1.bf16.msra.mxu0 %v278
        %309 = vmatprep.subr.bf16.mxu0 0
        %310 = vmatpush1.bf16.msra.mxu0 %v279
        %311 = vmatprep.subr.bf16.mxu0 0
        %312 = vmatpush1.bf16.msra.mxu0 0
        %313 = vmatprep.subr.bf16.mxu0 0
        %314 = vmatpush1.bf16.msra.mxu0 0
        %315 = vmatprep.subr.bf16.mxu0 0
        %316 = vmatpush1.bf16.msra.mxu0 0
        %317 = vmatprep.subr.bf16.mxu0 0
        %318 = vmatpush1.bf16.msra.mxu0 0
        %319 = vmatprep.subr.bf16.mxu0 0
        %320 = vmatpush1.bf16.msra.mxu0 0
        %321 = vmatprep.subr.bf16.mxu0 0
        %322 = vmatpush1.bf16.msra.mxu0 0
        %323 = vmatprep.subr.bf16.mxu0 0
        %324 = vmatpush1.bf16.msra.mxu0 0
        %325 = vmatprep.subr.bf16.mxu0 0
        %326 = vmatpush1.bf16.msra.mxu0 0
        %327 = vmatprep.subr.bf16.mxu0 0
        %328 = vmatpush1.bf16.msra.mxu0 0
        %329 = vmatprep.subr.bf16.mxu0 0
        %330 = vmatpush1.bf16.msra.mxu0 0
        %331 = vmatprep.subr.bf16.mxu0 0
        %332 = vmatpush1.bf16.msra.mxu0 0
        %333 = vmatprep.subr.bf16.mxu0 0
        %334 = vmatpush1.bf16.msra.mxu0 0
        %335 = vmatprep.mubr.bf16.mxu0 0
        %336 = vmatmul.mubr.bf16.gmra.mrb[0].mxu0 %v286
        %v337 = vpop.f32.mrb[0].mxu0
        %v338 = vadd.f32 0.0, %v337
        %v339 = vpop.f32.mrb[0].mxu0
        %v340 = vpop.f32.mrb[0].mxu0
        %v341 = vadd.f32 0.0, %v340
        %v342 = vpop.f32.mrb[0].mxu0
        %343 = vmatprep.mubr.bf16.mxu0 0
        %344 = vmatmul.mubr.bf16.gmra.mrb[0].mxu0 %v289
        %v345 = vpop.f32.mrb[0].mxu0
        %v346 = vadd.f32 0.0, %v345
        %v347 = vpop.f32.mrb[0].mxu0
        %v348 = vpop.f32.mrb[0].mxu0
        %v349 = vadd.f32 0.0, %v348
        %v350 = vpop.f32.mrb[0].mxu0
        %351 = vmatprep.mubr.bf16.mxu0 0
        %352 = vmatmul.mubr.bf16.gmra.mrb[0].mxu0 %v292
        %v353 = vpop.f32.mrb[0].mxu0
        %v354 = vadd.f32 0.0, %v353
        %v355 = vpop.f32.mrb[0].mxu0
        %v356 = vpop.f32.mrb[0].mxu0
        %v357 = vadd.f32 0.0, %v356
        %v358 = vpop.f32.mrb[0].mxu0
        %359 = vmatprep.mubr.bf16.mxu0 0
        %360 = vmatmul.mubr.bf16.gmra.mrb[0].mxu0 %v295
        %v361 = vpop.f32.mrb[0].mxu0
        %v362 = vadd.f32 0.0, %v361
        %v363 = vpop.f32.mrb[0].mxu0
        %v364 = vpop.f32.mrb[0].mxu0
        %v365 = vadd.f32 0.0, %v364
        %v366 = vpop.f32.mrb[0].mxu0
        %367 = vmatprep.mubr.bf16.mxu0 0
        %368 = vmatmul.mubr.bf16.gmra.mrb[0].mxu0 %v298
        %v369 = vpop.f32.mrb[0].mxu0
        %v370 = vadd.f32 0.0, %v369
        %v371 = vpop.f32.mrb[0].mxu0
        %v372 = vpop.f32.mrb[0].mxu0
        %v373 = vadd.f32 0.0, %v372
        %v374 = vpop.f32.mrb[0].mxu0
        %375 = vmatprep.mubr.bf16.mxu0 0
        %376 = vmatmul.mubr.bf16.gmra.mrb[0].mxu0 %v301
        %v377 = vpop.f32.mrb[0].mxu0
        %v378 = vadd.f32 0.0, %v377
        %v379 = vpop.f32.mrb[0].mxu0
        %v380 = vpop.f32.mrb[0].mxu0
        %v381 = vpop.f32.mrb[0].mxu0
        %382 = vdwg.mxu0
        %394 = vrot.lane.b32.xlu0 %v338, 120
        %v395 = vpop.permute.xlu0 %394
        %396 = vrot.lane.b32.xlu0 %v341, 120
        %v397 = vpop.permute.xlu0 %396
        %398 = vrot.lane.b32.xlu0 %v346, 120
        %v399 = vpop.permute.xlu0 %398
        %400 = vrot.lane.b32.xlu0 %v349, 120
        %v401 = vpop.permute.xlu0 %400
        %402 = vrot.lane.b32.xlu0 %v354, 120
        %v403 = vpop.permute.xlu0 %402
        %404 = vrot.lane.b32.xlu0 %v357, 120
        %v405 = vpop.permute.xlu0 %404
        %406 = vrot.lane.b32.xlu0 %v362, 120
        %v407 = vpop.permute.xlu0 %406
        %408 = vrot.lane.b32.xlu0 %v365, 120
        %v409 = vpop.permute.xlu0 %408
        %410 = vrot.lane.b32.xlu0 %v370, 120
        %v411 = vpop.permute.xlu0 %410
        %412 = vrot.lane.b32.xlu0 %v373, 120
        %v413 = vpop.permute.xlu0 %412
        %414 = vrot.lane.b32.xlu0 %v378, 120
        %v415 = vpop.permute.xlu0 %414
        %v427 = vmul.f32 %v338, %v395
        %v428 = vmul.f32 %v341, %v397
        %v429 = vmul.f32 %v346, %v399
        %v430 = vmul.f32 %v349, %v401
        %v431 = vmul.f32 %v354, %v403
        %v432 = vmul.f32 %v357, %v405
        %v433 = vmul.f32 %v362, %v407
        %v434 = vmul.f32 %v365, %v409
        %v435 = vmul.f32 %v370, %v411
        %v436 = vmul.f32 %v373, %v413
        %v437 = vmul.f32 %v378, %v415
        %v438 = vadd.f32 %v338, %v427
        %v439 = vadd.f32 %v341, %v428
        %v440 = vadd.f32 %v346, %v429
        %v441 = vadd.f32 %v349, %v430
        %v442 = vadd.f32 %v354, %v431
        %v443 = vadd.f32 %v357, %v432
        %v444 = vadd.f32 %v362, %v433
        %v445 = vadd.f32 %v365, %v434
        %v446 = vadd.f32 %v370, %v435
        %v447 = vadd.f32 %v373, %v436
        %v448 = vadd.f32 %v378, %v437
        %460 = vrot.lane.b32.xlu0 %v438, 16
        %v461 = vpop.permute.xlu0 %460
        %462 = vrot.lane.b32.xlu0 %v439, 16
        %v463 = vpop.permute.xlu0 %462
        %464 = vrot.lane.b32.xlu0 %v440, 16
        %v465 = vpop.permute.xlu0 %464
        %466 = vrot.lane.b32.xlu0 %v441, 16
        %v467 = vpop.permute.xlu0 %466
        %468 = vrot.lane.b32.xlu0 %v442, 16
        %v469 = vpop.permute.xlu0 %468
        %470 = vrot.lane.b32.xlu0 %v443, 16
        %v471 = vpop.permute.xlu0 %470
        %472 = vrot.lane.b32.xlu0 %v444, 16
        %v473 = vpop.permute.xlu0 %472
        %474 = vrot.lane.b32.xlu0 %v445, 16
        %v475 = vpop.permute.xlu0 %474
        %476 = vrot.lane.b32.xlu0 %v446, 16
        %v477 = vpop.permute.xlu0 %476
        %478 = vrot.lane.b32.xlu0 %v447, 16
        %v479 = vpop.permute.xlu0 %478
        %480 = vrot.lane.b32.xlu0 %v448, 16
        %v481 = vpop.permute.xlu0 %480
        %v493 = vmul.f32 %v338, %v461
        %v494 = vmul.f32 %v341, %v463
        %v495 = vmul.f32 %v346, %v465
        %v496 = vmul.f32 %v349, %v467
        %v497 = vmul.f32 %v354, %v469
        %v498 = vmul.f32 %v357, %v471
        %v499 = vmul.f32 %v362, %v473
        %v500 = vmul.f32 %v365, %v475
        %v501 = vmul.f32 %v370, %v477
        %v502 = vmul.f32 %v373, %v479
        %v503 = vmul.f32 %v378, %v481
        %v504 = vadd.f32 %v493, %v461
        %v505 = vadd.f32 %v494, %v463
        %v506 = vadd.f32 %v495, %v465
        %v507 = vadd.f32 %v496, %v467
        %v508 = vadd.f32 %v497, %v469
        %v509 = vadd.f32 %v498, %v471
        %v510 = vadd.f32 %v499, %v473
        %v511 = vadd.f32 %v500, %v475
        %v512 = vadd.f32 %v501, %v477
        %v513 = vadd.f32 %v502, %v479
        %v514 = vadd.f32 %v503, %v481
        %vm515 = vcmask 62464
        %516 = vst.msk [vmem:[#allocation2] sm:$0x3f] %vm515, 0.0
        %517 = vst.msk [vmem:[#allocation2 + $0x8] sm:$0x3f] %vm515, 0.0
        %518 = vst.msk [vmem:[#allocation2 + $0x10] sm:$0x3f] %vm515, 0.0
        %519 = vst.msk [vmem:[#allocation2 + $0x18] sm:$0x3f] %vm515, 0.0
        %520 = vst.msk [vmem:[#allocation2 + $0x20] sm:$0x3f] %vm515, 0.0
        %521 = vst.msk [vmem:[#allocation2 + $0x28] sm:$0x3f] %vm515, 0.0
        %s522 = scalar_lea.vmem [#allocation2], 48
        %523 = vst.msk [vmem:[%s522] sm:$0x3f] %vm515, 0.0
        %524 = vst.msk [vmem:[%s522 + $0x8] sm:$0x3f] %vm515, 0.0
        %525 = vst.msk [vmem:[%s522 + $0x10] sm:$0x3f] %vm515, 0.0
        %526 = vst.msk [vmem:[%s522 + $0x18] sm:$0x3f] %vm515, 0.0
        %527 = vst.msk [vmem:[%s522 + $0x20] sm:$0x3f] %vm515, 0.0
        %528 = vst.msk [vmem:[%s522 + $0x28] sm:$0x3f] %vm515, 0.0
        %s529 = scalar_lea.vmem [#allocation2], 96
        %530 = vst.msk [vmem:[%s529] sm:$0x3f] %vm515, 0.0
        %531 = vst.msk [vmem:[%s529 + $0x8] sm:$0x3f] %vm515, 0.0
        %532 = vst.msk [vmem:[%s529 + $0x10] sm:$0x3f] %vm515, 0.0
        %533 = vst.msk [vmem:[%s529 + $0x18] sm:$0x3f] %vm515, 0.0
        %534 = vst.msk [vmem:[%s529 + $0x20] sm:$0x3f] %vm515, 0.0
        %535 = vst.msk [vmem:[%s529 + $0x28] sm:$0x3f] %vm515, 0.0
        %s536 = scalar_lea.vmem [#allocation2], 144
        %537 = vst.msk [vmem:[%s536] sm:$0x3f] %vm515, 0.0
        %538 = vst.msk [vmem:[%s536 + $0x8] sm:$0x3f] %vm515, 0.0
        %539 = vst.msk [vmem:[%s536 + $0x10] sm:$0x3f] %vm515, 0.0
        %540 = vst.msk [vmem:[%s536 + $0x18] sm:$0x3f] %vm515, 0.0
        %541 = vst.msk [vmem:[%s536 + $0x20] sm:$0x3f] %vm515, 0.0
        %542 = vst.msk [vmem:[%s536 + $0x28] sm:$0x3f] %vm515, 0.0
        %544 = vrot.lane.b32.xlu0 %v504, 112
        %v545 = vpop.permute.xlu0 %544
        %s547 = scalar_lea.vmem [#allocation2], 8
        %vm548 = vcmask 61440
        %549 = vst.msk [vmem:[%s547 + $0x1] sm:$0x1f] %vm548, %v545
        %551 = vrot.lane.b32.xlu0 %v505, 112
        %v552 = vpop.permute.xlu0 %551
        %s554 = scalar_lea.vmem [#allocation2], 56
        %vm555 = vcmask 64517
        %556 = vst.msk [vmem:[%s554 - $0x4] sm:$0xe0] %vm555, %v545
        %vm557 = vcmask 57344
        %558 = vst.msk [vmem:[%s554 + $0x4] sm:$0x1] %vm557, %v552
        %s559 = scalar_lea.vmem [#allocation2], 104
        %vm560 = vcmask 62465
        %561 = vst.msk [vmem:[%s559] sm:$0x3e] %vm560, %v552
        %563 = vrot.lane.b32.xlu0 %v506, 112
        %v564 = vpop.permute.xlu0 %563
        %s566 = scalar_lea.vmem [#allocation2], 152
        %vm567 = vcmask 64518
        %568 = vst.msk [vmem:[%s566 - $0x5] sm:$0xc0] %vm567, %v552
        %vm569 = vcmask 58368
        %570 = vst.msk [vmem:[%s566 + $0x3] sm:$0x3] %vm569, %v564
        %s571 = scalar_lea.vmem [#allocation2], 16
        %vm572 = vcmask 63490
        %573 = vst.msk [vmem:[%s571 - $0x1] sm:$0x7c] %vm572, %v564
        %575 = vrot.lane.b32.xlu0 %v507, 112
        %v576 = vpop.permute.xlu0 %575
        %s578 = scalar_lea.vmem [#allocation2], 64
        %vm579 = vcmask 64519
        %580 = vst.msk [vmem:[%s578 - $0x6] sm:$0x80] %vm579, %v564
        %vm581 = vcmask 59392
        %582 = vst.msk [vmem:[%s578 + $0x2] sm:$0x7] %vm581, %v576
        %s583 = scalar_lea.vmem [#allocation2], 112
        %vm584 = vcmask 64515
        %585 = vst.msk [vmem:[%s583 - $0x2] sm:$0xf8] %vm584, %v576
        %587 = vrot.lane.b32.xlu0 %v508, 112
        %v588 = vpop.permute.xlu0 %587
        %s590 = scalar_lea.vmem [#allocation2], 160
        %vm591 = vcmask 60416
        %592 = vst.msk [vmem:[%s590 + $0x1] sm:$0xf] %vm591, %v588
        %594 = vrot.lane.b32.xlu0 %v509, 112
        %v595 = vpop.permute.xlu0 %594
        %s597 = scalar_lea.vmem [#allocation2], 24
        %vm598 = vcmask 64516
        %599 = vst.msk [vmem:[%s597 - $0x3] sm:$0xf0] %vm598, %v588
        %600 = vst.msk [vmem:[%s597 + $0x5] sm:$0x1] %vm557, %v595
        %s601 = scalar_lea.vmem [#allocation2], 72
        %vm602 = vcmask 61441
        %603 = vst.msk [vmem:[%s601] sm:$0x1e] %vm602, %v595
        %605 = vrot.lane.b32.xlu0 %v510, 112
        %v606 = vpop.permute.xlu0 %605
        %s608 = scalar_lea.vmem [#allocation2], 120
        %609 = vst.msk [vmem:[%s608 - $0x4] sm:$0xe0] %vm555, %v595
        %610 = vst.msk [vmem:[%s608 + $0x4] sm:$0x3] %vm569, %v606
        %s611 = scalar_lea.vmem [#allocation2], 168
        %vm612 = vcmask 62466
        %613 = vst.msk [vmem:[%s611 - $0x1] sm:$0x3c] %vm612, %v606
        %615 = vrot.lane.b32.xlu0 %v511, 112
        %v616 = vpop.permute.xlu0 %615
        %s618 = scalar_lea.vmem [#allocation2], 32
        %619 = vst.msk [vmem:[%s618 - $0x5] sm:$0xc0] %vm567, %v606
        %620 = vst.msk [vmem:[%s618 + $0x3] sm:$0x7] %vm581, %v616
        %s621 = scalar_lea.vmem [#allocation2], 80
        %vm622 = vcmask 63491
        %623 = vst.msk [vmem:[%s621 - $0x2] sm:$0x78] %vm622, %v616
        %625 = vrot.lane.b32.xlu0 %v512, 112
        %v626 = vpop.permute.xlu0 %625
        %s628 = scalar_lea.vmem [#allocation2], 128
        %629 = vst.msk [vmem:[%s628 - $0x6] sm:$0x80] %vm579, %v616
        %630 = vst.msk [vmem:[%s628 + $0x2] sm:$0xf] %vm591, %v626
        %s631 = scalar_lea.vmem [#allocation2], 176
        %632 = vst.msk [vmem:[%s631 - $0x3] sm:$0xf0] %vm598, %v626
        %634 = vrot.lane.b32.xlu0 %v513, 112
        %v635 = vpop.permute.xlu0 %634
        %s637 = scalar_lea.vmem [#allocation2], 40
        %638 = vst.msk [vmem:[%s637 + $0x1] sm:$0x1f] %vm548, %v635
        %640 = vrot.lane.b32.xlu0 %v514, 112
        %v641 = vpop.permute.xlu0 %640
        %s643 = scalar_lea.vmem [#allocation2], 88
        %644 = vst.msk [vmem:[%s643 - $0x4] sm:$0xe0] %vm555, %v635
        %645 = vst.msk [vmem:[%s643 + $0x4] sm:$0x1] %vm557, %v641
        %v646 = vld [vmem:[#allocation2] sm:$0x1f]
        %v647 = vld [vmem:[#allocation2 + $0x8] sm:$0x1f]
        %v648 = vld [vmem:[#allocation2 + $0x10] sm:$0x1f]
        %v649 = vld [vmem:[#allocation2 + $0x18] sm:$0x1f]
        %v650 = vld [vmem:[#allocation2 + $0x20] sm:$0x1f]
        %v651 = vld [vmem:[%s2] sm:$0x1]
        %v652 = vlaneseq
        %v653 = vshrl.u32 %v652, 7
        %v654 = vsub.s32 0, %v653
        %v655 = vrot.slane %v651, %v654
        %v656 = vmul.f32 %v646, %v655
        %v657 = vmul.f32 %v647, %v655
        %v658 = vmul.f32 %v648, %v655
        %v659 = vmul.f32 %v649, %v655
        %v660 = vmul.f32 %v650, %v655
        %v661 = vadd.f32 %v656, 0.0
        %v662 = vadd.f32 %v657, 0.0
        %v663 = vadd.f32 %v658, 0.0
        %v664 = vadd.f32 %v659, 0.0
        %v665 = vadd.f32 %v660, 0.0
        %v666 = vld [vmem:[%s2 + $0x1] sm:$0x1]
        %v667 = vlaneseq
        %v668 = vshrl.u32 %v667, 7
        %v669 = vsub.s32 0, %v668
        %v670 = vrot.slane %v666, %v669
        %v671 = vmul.f32 %v646, %v670
        %v672 = vmul.f32 %v647, %v670
        %v673 = vmul.f32 %v648, %v670
        %v674 = vmul.f32 %v649, %v670
        %v675 = vmul.f32 %v650, %v670
        %v676 = vadd.f32 %v671, 0.0
        %v677 = vadd.f32 %v672, 0.0
        %v678 = vadd.f32 %v673, 0.0
        %v679 = vadd.f32 %v674, 0.0
        %v680 = vadd.f32 %v675, 0.0
        %v681 = vld [vmem:[%s2 + $0x2] sm:$0x1]
        %v682 = vlaneseq
        %v683 = vshrl.u32 %v682, 7
        %v684 = vsub.s32 0, %v683
        %v685 = vrot.slane %v681, %v684
        %v686 = vmul.f32 %v646, %v685
        %v687 = vmul.f32 %v647, %v685
        %v688 = vmul.f32 %v648, %v685
        %v689 = vmul.f32 %v649, %v685
        %v690 = vmul.f32 %v650, %v685
        %v691 = vadd.f32 %v686, 0.0
        %v692 = vadd.f32 %v687, 0.0
        %v693 = vadd.f32 %v688, 0.0
        %v694 = vadd.f32 %v689, 0.0
        %v695 = vadd.f32 %v690, 0.0
        %v696 = vld [vmem:[%s522] sm:$0x1f]
        %v697 = vld [vmem:[%s522 + $0x8] sm:$0x1f]
        %v698 = vld [vmem:[%s522 + $0x10] sm:$0x1f]
        %v699 = vld [vmem:[%s522 + $0x18] sm:$0x1f]
        %v700 = vld [vmem:[%s522 + $0x20] sm:$0x1f]
        %s701 = scalar_lea.vmem %s2, 4
        %v702 = vld [vmem:[%s701] sm:$0x1]
        %v703 = vlaneseq
        %v704 = vshrl.u32 %v703, 7
        %v705 = vsub.s32 0, %v704
        %v706 = vrot.slane %v702, %v705
        %v707 = vmul.f32 %v696, %v706
        %v708 = vmul.f32 %v697, %v706
        %v709 = vmul.f32 %v698, %v706
        %v710 = vmul.f32 %v699, %v706
        %v711 = vmul.f32 %v700, %v706
        %v712 = vadd.f32 %v661, %v707
        %v713 = vadd.f32 %v662, %v708
        %v714 = vadd.f32 %v663, %v709
        %v715 = vadd.f32 %v664, %v710
        %v716 = vadd.f32 %v665, %v711
        %v717 = vld [vmem:[%s701 + $0x1] sm:$0x1]
        %v718 = vlaneseq
        %v719 = vshrl.u32 %v718, 7
        %v720 = vsub.s32 0, %v719
        %v721 = vrot.slane %v717, %v720
        %v722 = vmul.f32 %v696, %v721
        %v723 = vmul.f32 %v697, %v721
        %v724 = vmul.f32 %v698, %v721
        %v725 = vmul.f32 %v699, %v721
        %v726 = vmul.f32 %v700, %v721
        %v727 = vadd.f32 %v676, %v722
        %v728 = vadd.f32 %v677, %v723
        %v729 = vadd.f32 %v678, %v724
        %v730 = vadd.f32 %v679, %v725
        %v731 = vadd.f32 %v680, %v726
        %v732 = vld [vmem:[%s701 + $0x2] sm:$0x1]
        %v733 = vlaneseq
        %v734 = vshrl.u32 %v733, 7
        %v735 = vsub.s32 0, %v734
        %v736 = vrot.slane %v732, %v735
        %v737 = vmul.f32 %v696, %v736
        %v738 = vmul.f32 %v697, %v736
        %v739 = vmul.f32 %v698, %v736
        %v740 = vmul.f32 %v699, %v736
        %v741 = vmul.f32 %v700, %v736
        %v742 = vadd.f32 %v691, %v737
        %v743 = vadd.f32 %v692, %v738
        %v744 = vadd.f32 %v693, %v739
        %v745 = vadd.f32 %v694, %v740
        %v746 = vadd.f32 %v695, %v741
        %v747 = vld [vmem:[#allocation2 + $0x1] sm:$0x1f]
        %v748 = vld [vmem:[#allocation2 + $0x9] sm:$0x1f]
        %v749 = vld [vmem:[#allocation2 + $0x11] sm:$0x1f]
        %v750 = vld [vmem:[#allocation2 + $0x19] sm:$0x1f]
        %v751 = vld [vmem:[#allocation2 + $0x21] sm:$0x1f]
        %s752 = scalar_lea.vmem %s2, 8
        %v753 = vld [vmem:[%s752] sm:$0x1]
        %v754 = vlaneseq
        %v755 = vshrl.u32 %v754, 7
        %v756 = vsub.s32 0, %v755
        %v757 = vrot.slane %v753, %v756
        %v758 = vmul.f32 %v747, %v757
        %v759 = vmul.f32 %v748, %v757
        %v760 = vmul.f32 %v749, %v757
        %v761 = vmul.f32 %v750, %v757
        %v762 = vmul.f32 %v751, %v757
        %v763 = vadd.f32 %v712, %v758
        %v764 = vadd.f32 %v713, %v759
        %v765 = vadd.f32 %v714, %v760
        %v766 = vadd.f32 %v715, %v761
        %v767 = vadd.f32 %v716, %v762
        %v768 = vld [vmem:[%s752 + $0x1] sm:$0x1]
        %v769 = vlaneseq
        %v770 = vshrl.u32 %v769, 7
        %v771 = vsub.s32 0, %v770
        %v772 = vrot.slane %v768, %v771
        %v773 = vmul.f32 %v747, %v772
        %v774 = vmul.f32 %v748, %v772
        %v775 = vmul.f32 %v749, %v772
        %v776 = vmul.f32 %v750, %v772
        %v777 = vmul.f32 %v751, %v772
        %v778 = vadd.f32 %v727, %v773
        %v779 = vadd.f32 %v728, %v774
        %v780 = vadd.f32 %v729, %v775
        %v781 = vadd.f32 %v730, %v776
        %v782 = vadd.f32 %v731, %v777
        %v783 = vld [vmem:[%s752 + $0x2] sm:$0x1]
        %v784 = vlaneseq
        %v785 = vshrl.u32 %v784, 7
        %v786 = vsub.s32 0, %v785
        %v787 = vrot.slane %v783, %v786
        %v788 = vmul.f32 %v747, %v787
        %v789 = vmul.f32 %v748, %v787
        %v790 = vmul.f32 %v749, %v787
        %v791 = vmul.f32 %v750, %v787
        %v792 = vmul.f32 %v751, %v787
        %v793 = vadd.f32 %v742, %v788
        %v794 = vadd.f32 %v743, %v789
        %v795 = vadd.f32 %v744, %v790
        %v796 = vadd.f32 %v745, %v791
        %v797 = vadd.f32 %v746, %v792
        %v798 = vld [vmem:[%s522 + $0x1] sm:$0x1f]
        %v799 = vld [vmem:[%s522 + $0x9] sm:$0x1f]
        %v800 = vld [vmem:[%s522 + $0x11] sm:$0x1f]
        %v801 = vld [vmem:[%s522 + $0x19] sm:$0x1f]
        %v802 = vld [vmem:[%s522 + $0x21] sm:$0x1f]
        %s803 = scalar_lea.vmem %s2, 12
        %v804 = vld [vmem:[%s803] sm:$0x1]
        %v805 = vlaneseq
        %v806 = vshrl.u32 %v805, 7
        %v807 = vsub.s32 0, %v806
        %v808 = vrot.slane %v804, %v807
        %v809 = vmul.f32 %v798, %v808
        %v810 = vmul.f32 %v799, %v808
        %v811 = vmul.f32 %v800, %v808
        %v812 = vmul.f32 %v801, %v808
        %v813 = vmul.f32 %v802, %v808
        %v814 = vadd.f32 %v763, %v809
        %v815 = vadd.f32 %v764, %v810
        %v816 = vadd.f32 %v765, %v811
        %v817 = vadd.f32 %v766, %v812
        %v818 = vadd.f32 %v767, %v813
        %v819 = vld [vmem:[%s803 + $0x1] sm:$0x1]
        %v820 = vlaneseq
        %v821 = vshrl.u32 %v820, 7
        %v822 = vsub.s32 0, %v821
        %v823 = vrot.slane %v819, %v822
        %v824 = vmul.f32 %v798, %v823
        %v825 = vmul.f32 %v799, %v823
        %v826 = vmul.f32 %v800, %v823
        %v827 = vmul.f32 %v801, %v823
        %v828 = vmul.f32 %v802, %v823
        %v829 = vadd.f32 %v778, %v824
        %v830 = vadd.f32 %v779, %v825
        %v831 = vadd.f32 %v780, %v826
        %v832 = vadd.f32 %v781, %v827
        %v833 = vadd.f32 %v782, %v828
        %v834 = vld [vmem:[%s803 + $0x2] sm:$0x1]
        %v835 = vlaneseq
        %v836 = vshrl.u32 %v835, 7
        %v837 = vsub.s32 0, %v836
        %v838 = vrot.slane %v834, %v837
        %v839 = vmul.f32 %v798, %v838
        %v840 = vmul.f32 %v799, %v838
        %v841 = vmul.f32 %v800, %v838
        %v842 = vmul.f32 %v801, %v838
        %v843 = vmul.f32 %v802, %v838
        %v844 = vadd.f32 %v793, %v839
        %v845 = vadd.f32 %v794, %v840
        %v846 = vadd.f32 %v795, %v841
        %v847 = vadd.f32 %v796, %v842
        %v848 = vadd.f32 %v797, %v843
        %v849 = vld [vmem:[%s529] sm:$0x1f]
        %v850 = vld [vmem:[%s529 + $0x8] sm:$0x1f]
        %v851 = vld [vmem:[%s529 + $0x10] sm:$0x1f]
        %v852 = vld [vmem:[%s529 + $0x18] sm:$0x1f]
        %v853 = vld [vmem:[%s529 + $0x20] sm:$0x1f]
        %s854 = scalar_lea.vmem %s2, 16
        %v855 = vld [vmem:[%s854] sm:$0x1]
        %v856 = vlaneseq
        %v857 = vshrl.u32 %v856, 7
        %v858 = vsub.s32 0, %v857
        %v859 = vrot.slane %v855, %v858
        %v860 = vmul.f32 %v849, %v859
        %v861 = vmul.f32 %v850, %v859
        %v862 = vmul.f32 %v851, %v859
        %v863 = vmul.f32 %v852, %v859
        %v864 = vmul.f32 %v853, %v859
        %v865 = vadd.f32 %v814, %v860
        %v866 = vadd.f32 %v815, %v861
        %v867 = vadd.f32 %v816, %v862
        %v868 = vadd.f32 %v817, %v863
        %v869 = vadd.f32 %v818, %v864
        %v870 = vld [vmem:[%s854 + $0x1] sm:$0x1]
        %v871 = vlaneseq
        %v872 = vshrl.u32 %v871, 7
        %v873 = vsub.s32 0, %v872
        %v874 = vrot.slane %v870, %v873
        %v875 = vmul.f32 %v849, %v874
        %v876 = vmul.f32 %v850, %v874
        %v877 = vmul.f32 %v851, %v874
        %v878 = vmul.f32 %v852, %v874
        %v879 = vmul.f32 %v853, %v874
        %v880 = vadd.f32 %v829, %v875
        %v881 = vadd.f32 %v830, %v876
        %v882 = vadd.f32 %v831, %v877
        %v883 = vadd.f32 %v832, %v878
        %v884 = vadd.f32 %v833, %v879
        %v885 = vld [vmem:[%s854 + $0x2] sm:$0x1]
        %v886 = vlaneseq
        %v887 = vshrl.u32 %v886, 7
        %v888 = vsub.s32 0, %v887
        %v889 = vrot.slane %v885, %v888
        %v890 = vmul.f32 %v849, %v889
        %v891 = vmul.f32 %v850, %v889
        %v892 = vmul.f32 %v851, %v889
        %v893 = vmul.f32 %v852, %v889
        %v894 = vmul.f32 %v853, %v889
        %v895 = vadd.f32 %v844, %v890
        %v896 = vadd.f32 %v845, %v891
        %v897 = vadd.f32 %v846, %v892
        %v898 = vadd.f32 %v847, %v893
        %v899 = vadd.f32 %v848, %v894
        %v900 = vld [vmem:[%s536] sm:$0x1f]
        %v901 = vld [vmem:[%s536 + $0x8] sm:$0x1f]
        %v902 = vld [vmem:[%s536 + $0x10] sm:$0x1f]
        %v903 = vld [vmem:[%s536 + $0x18] sm:$0x1f]
        %v904 = vld [vmem:[%s536 + $0x20] sm:$0x1f]
        %s905 = scalar_lea.vmem %s2, 20
        %v906 = vld [vmem:[%s905] sm:$0x1]
        %v907 = vlaneseq
        %v908 = vshrl.u32 %v907, 7
        %v909 = vsub.s32 0, %v908
        %v910 = vrot.slane %v906, %v909
        %v911 = vmul.f32 %v900, %v910
        %v912 = vmul.f32 %v901, %v910
        %v913 = vmul.f32 %v902, %v910
        %v914 = vmul.f32 %v903, %v910
        %v915 = vmul.f32 %v904, %v910
        %v916 = vadd.f32 %v865, %v911
        %v917 = vadd.f32 %v866, %v912
        %v918 = vadd.f32 %v867, %v913
        %v919 = vadd.f32 %v868, %v914
        %v920 = vadd.f32 %v869, %v915
        %v921 = vld [vmem:[%s905 + $0x1] sm:$0x1]
        %v922 = vlaneseq
        %v923 = vshrl.u32 %v922, 7
        %v924 = vsub.s32 0, %v923
        %v925 = vrot.slane %v921, %v924
        %v926 = vmul.f32 %v900, %v925
        %v927 = vmul.f32 %v901, %v925
        %v928 = vmul.f32 %v902, %v925
        %v929 = vmul.f32 %v903, %v925
        %v930 = vmul.f32 %v904, %v925
        %v931 = vadd.f32 %v880, %v926
        %v932 = vadd.f32 %v881, %v927
        %v933 = vadd.f32 %v882, %v928
        %v934 = vadd.f32 %v883, %v929
        %v935 = vadd.f32 %v884, %v930
        %v936 = vld [vmem:[%s905 + $0x2] sm:$0x1]
        %v937 = vlaneseq
        %v938 = vshrl.u32 %v937, 7
        %v939 = vsub.s32 0, %v938
        %v940 = vrot.slane %v936, %v939
        %v941 = vmul.f32 %v900, %v940
        %v942 = vmul.f32 %v901, %v940
        %v943 = vmul.f32 %v902, %v940
        %v944 = vmul.f32 %v903, %v940
        %v945 = vmul.f32 %v904, %v940
        %v946 = vadd.f32 %v895, %v941
        %v947 = vadd.f32 %v896, %v942
        %v948 = vadd.f32 %v897, %v943
        %v949 = vadd.f32 %v898, %v944
        %v950 = vadd.f32 %v899, %v945
        %v951 = vld [vmem:[%s529 + $0x1] sm:$0x1f]
        %v952 = vld [vmem:[%s529 + $0x9] sm:$0x1f]
        %v953 = vld [vmem:[%s529 + $0x11] sm:$0x1f]
        %v954 = vld [vmem:[%s529 + $0x19] sm:$0x1f]
        %v955 = vld [vmem:[%s529 + $0x21] sm:$0x1f]
        %s956 = scalar_lea.vmem %s2, 24
        %v957 = vld [vmem:[%s956] sm:$0x1]
        %v958 = vlaneseq
        %v959 = vshrl.u32 %v958, 7
        %v960 = vsub.s32 0, %v959
        %v961 = vrot.slane %v957, %v960
        %v962 = vmul.f32 %v951, %v961
        %v963 = vmul.f32 %v952, %v961
        %v964 = vmul.f32 %v953, %v961
        %v965 = vmul.f32 %v954, %v961
        %v966 = vmul.f32 %v955, %v961
        %v967 = vadd.f32 %v916, %v962
        %v968 = vadd.f32 %v917, %v963
        %v969 = vadd.f32 %v918, %v964
        %v970 = vadd.f32 %v919, %v965
        %v971 = vadd.f32 %v920, %v966
        %v972 = vld [vmem:[%s956 + $0x1] sm:$0x1]
        %v973 = vlaneseq
        %v974 = vshrl.u32 %v973, 7
        %v975 = vsub.s32 0, %v974
        %v976 = vrot.slane %v972, %v975
        %v977 = vmul.f32 %v951, %v976
        %v978 = vmul.f32 %v952, %v976
        %v979 = vmul.f32 %v953, %v976
        %v980 = vmul.f32 %v954, %v976
        %v981 = vmul.f32 %v955, %v976
        %v982 = vadd.f32 %v931, %v977
        %v983 = vadd.f32 %v932, %v978
        %v984 = vadd.f32 %v933, %v979
        %v985 = vadd.f32 %v934, %v980
        %v986 = vadd.f32 %v935, %v981
        %v987 = vld [vmem:[%s956 + $0x2] sm:$0x1]
        %v988 = vlaneseq
        %v989 = vshrl.u32 %v988, 7
        %v990 = vsub.s32 0, %v989
        %v991 = vrot.slane %v987, %v990
        %v992 = vmul.f32 %v951, %v991
        %v993 = vmul.f32 %v952, %v991
        %v994 = vmul.f32 %v953, %v991
        %v995 = vmul.f32 %v954, %v991
        %v996 = vmul.f32 %v955, %v991
        %v997 = vadd.f32 %v946, %v992
        %v998 = vadd.f32 %v947, %v993
        %v999 = vadd.f32 %v948, %v994
        %v1000 = vadd.f32 %v949, %v995
        %v1001 = vadd.f32 %v950, %v996
        %v1002 = vld [vmem:[%s536 + $0x1] sm:$0x1f]
        %v1003 = vld [vmem:[%s536 + $0x9] sm:$0x1f]
        %v1004 = vld [vmem:[%s536 + $0x11] sm:$0x1f]
        %v1005 = vld [vmem:[%s536 + $0x19] sm:$0x1f]
        %v1006 = vld [vmem:[%s536 + $0x21] sm:$0x1f]
        %s1007 = scalar_lea.vmem %s2, 28
        %v1008 = vld [vmem:[%s1007] sm:$0x1]
        %v1009 = vlaneseq
        %v1010 = vshrl.u32 %v1009, 7
        %v1011 = vsub.s32 0, %v1010
        %v1012 = vrot.slane %v1008, %v1011
        %v1013 = vmul.f32 %v1002, %v1012
        %v1014 = vmul.f32 %v1003, %v1012
        %v1015 = vmul.f32 %v1004, %v1012
        %v1016 = vmul.f32 %v1005, %v1012
        %v1017 = vmul.f32 %v1006, %v1012
        %v1018 = vadd.f32 %v967, %v1013
        %v1019 = vadd.f32 %v968, %v1014
        %v1020 = vadd.f32 %v969, %v1015
        %v1021 = vadd.f32 %v970, %v1016
        %v1022 = vadd.f32 %v971, %v1017
        %v1023 = vld [vmem:[%s1007 + $0x1] sm:$0x1]
        %v1024 = vlaneseq
        %v1025 = vshrl.u32 %v1024, 7
        %v1026 = vsub.s32 0, %v1025
        %v1027 = vrot.slane %v1023, %v1026
        %v1028 = vmul.f32 %v1002, %v1027
        %v1029 = vmul.f32 %v1003, %v1027
        %v1030 = vmul.f32 %v1004, %v1027
        %v1031 = vmul.f32 %v1005, %v1027
        %v1032 = vmul.f32 %v1006, %v1027
        %v1033 = vadd.f32 %v982, %v1028
        %v1034 = vadd.f32 %v983, %v1029
        %v1035 = vadd.f32 %v984, %v1030
        %v1036 = vadd.f32 %v985, %v1031
        %v1037 = vadd.f32 %v986, %v1032
        %v1038 = vld [vmem:[%s1007 + $0x2] sm:$0x1]
        %v1039 = vlaneseq
        %v1040 = vshrl.u32 %v1039, 7
        %v1041 = vsub.s32 0, %v1040
        %v1042 = vrot.slane %v1038, %v1041
        %v1043 = vmul.f32 %v1002, %v1042
        %v1044 = vmul.f32 %v1003, %v1042
        %v1045 = vmul.f32 %v1004, %v1042
        %v1046 = vmul.f32 %v1005, %v1042
        %v1047 = vmul.f32 %v1006, %v1042
        %v1048 = vadd.f32 %v997, %v1043
        %v1049 = vadd.f32 %v998, %v1044
        %v1050 = vadd.f32 %v999, %v1045
        %v1051 = vadd.f32 %v1000, %v1046
        %v1052 = vadd.f32 %v1001, %v1047
        %v1053 = vld [vmem:[%s547] sm:$0x1f]
        %v1054 = vld [vmem:[%s547 + $0x8] sm:$0x1f]
        %v1055 = vld [vmem:[%s547 + $0x10] sm:$0x1f]
        %v1056 = vld [vmem:[%s547 + $0x18] sm:$0x1f]
        %v1057 = vld [vmem:[%s547 + $0x20] sm:$0x1f]
        %s1058 = scalar_lea.vmem %s2, 32
        %v1059 = vld [vmem:[%s1058] sm:$0x1]
        %v1060 = vlaneseq
        %v1061 = vshrl.u32 %v1060, 7
        %v1062 = vsub.s32 0, %v1061
        %v1063 = vrot.slane %v1059, %v1062
        %v1064 = vmul.f32 %v1053, %v1063
        %v1065 = vmul.f32 %v1054, %v1063
        %v1066 = vmul.f32 %v1055, %v1063
        %v1067 = vmul.f32 %v1056, %v1063
        %v1068 = vmul.f32 %v1057, %v1063
        %v1069 = vadd.f32 %v1018, %v1064
        %v1070 = vadd.f32 %v1019, %v1065
        %v1071 = vadd.f32 %v1020, %v1066
        %v1072 = vadd.f32 %v1021, %v1067
        %v1073 = vadd.f32 %v1022, %v1068
        %v1074 = vld [vmem:[%s1058 + $0x1] sm:$0x1]
        %v1075 = vlaneseq
        %v1076 = vshrl.u32 %v1075, 7
        %v1077 = vsub.s32 0, %v1076
        %v1078 = vrot.slane %v1074, %v1077
        %v1079 = vmul.f32 %v1053, %v1078
        %v1080 = vmul.f32 %v1054, %v1078
        %v1081 = vmul.f32 %v1055, %v1078
        %v1082 = vmul.f32 %v1056, %v1078
        %v1083 = vmul.f32 %v1057, %v1078
        %v1084 = vadd.f32 %v1033, %v1079
        %v1085 = vadd.f32 %v1034, %v1080
        %v1086 = vadd.f32 %v1035, %v1081
        %v1087 = vadd.f32 %v1036, %v1082
        %v1088 = vadd.f32 %v1037, %v1083
        %v1089 = vld [vmem:[%s1058 + $0x2] sm:$0x1]
        %v1090 = vlaneseq
        %v1091 = vshrl.u32 %v1090, 7
        %v1092 = vsub.s32 0, %v1091
        %v1093 = vrot.slane %v1089, %v1092
        %v1094 = vmul.f32 %v1053, %v1093
        %v1095 = vmul.f32 %v1054, %v1093
        %v1096 = vmul.f32 %v1055, %v1093
        %v1097 = vmul.f32 %v1056, %v1093
        %v1098 = vmul.f32 %v1057, %v1093
        %v1099 = vadd.f32 %v1048, %v1094
        %v1100 = vadd.f32 %v1049, %v1095
        %v1101 = vadd.f32 %v1050, %v1096
        %v1102 = vadd.f32 %v1051, %v1097
        %v1103 = vadd.f32 %v1052, %v1098
        %v1104 = vld [vmem:[%s554] sm:$0x1f]
        %v1105 = vld [vmem:[%s554 + $0x8] sm:$0x1f]
        %v1106 = vld [vmem:[%s554 + $0x10] sm:$0x1f]
        %v1107 = vld [vmem:[%s554 + $0x18] sm:$0x1f]
        %v1108 = vld [vmem:[%s554 + $0x20] sm:$0x1f]
        %s1109 = scalar_lea.vmem %s2, 36
        %v1110 = vld [vmem:[%s1109] sm:$0x1]
        %v1111 = vlaneseq
        %v1112 = vshrl.u32 %v1111, 7
        %v1113 = vsub.s32 0, %v1112
        %v1114 = vrot.slane %v1110, %v1113
        %v1115 = vmul.f32 %v1104, %v1114
        %v1116 = vmul.f32 %v1105, %v1114
        %v1117 = vmul.f32 %v1106, %v1114
        %v1118 = vmul.f32 %v1107, %v1114
        %v1119 = vmul.f32 %v1108, %v1114
        %v1120 = vadd.f32 %v1069, %v1115
        %v1121 = vadd.f32 %v1070, %v1116
        %v1122 = vadd.f32 %v1071, %v1117
        %v1123 = vadd.f32 %v1072, %v1118
        %v1124 = vadd.f32 %v1073, %v1119
        %v1125 = vld [vmem:[%s1109 + $0x1] sm:$0x1]
        %v1126 = vlaneseq
        %v1127 = vshrl.u32 %v1126, 7
        %v1128 = vsub.s32 0, %v1127
        %v1129 = vrot.slane %v1125, %v1128
        %v1130 = vmul.f32 %v1104, %v1129
        %v1131 = vmul.f32 %v1105, %v1129
        %v1132 = vmul.f32 %v1106, %v1129
        %v1133 = vmul.f32 %v1107, %v1129
        %v1134 = vmul.f32 %v1108, %v1129
        %v1135 = vadd.f32 %v1084, %v1130
        %v1136 = vadd.f32 %v1085, %v1131
        %v1137 = vadd.f32 %v1086, %v1132
        %v1138 = vadd.f32 %v1087, %v1133
        %v1139 = vadd.f32 %v1088, %v1134
        %v1140 = vld [vmem:[%s1109 + $0x2] sm:$0x1]
        %v1141 = vlaneseq
        %v1142 = vshrl.u32 %v1141, 7
        %v1143 = vsub.s32 0, %v1142
        %v1144 = vrot.slane %v1140, %v1143
        %v1145 = vmul.f32 %v1104, %v1144
        %v1146 = vmul.f32 %v1105, %v1144
        %v1147 = vmul.f32 %v1106, %v1144
        %v1148 = vmul.f32 %v1107, %v1144
        %v1149 = vmul.f32 %v1108, %v1144
        %v1150 = vadd.f32 %v1099, %v1145
        %v1151 = vadd.f32 %v1100, %v1146
        %v1152 = vadd.f32 %v1101, %v1147
        %v1153 = vadd.f32 %v1102, %v1148
        %v1154 = vadd.f32 %v1103, %v1149
        %v1155 = vld [vmem:[%s547 + $0x1] sm:$0x1f]
        %v1156 = vld [vmem:[%s547 + $0x9] sm:$0x1f]
        %v1157 = vld [vmem:[%s547 + $0x11] sm:$0x1f]
        %v1158 = vld [vmem:[%s547 + $0x19] sm:$0x1f]
        %v1159 = vld [vmem:[%s547 + $0x21] sm:$0x1f]
        %s1160 = scalar_lea.vmem %s2, 40
        %v1161 = vld [vmem:[%s1160] sm:$0x1]
        %v1162 = vlaneseq
        %v1163 = vshrl.u32 %v1162, 7
        %v1164 = vsub.s32 0, %v1163
        %v1165 = vrot.slane %v1161, %v1164
        %v1166 = vmul.f32 %v1155, %v1165
        %v1167 = vmul.f32 %v1156, %v1165
        %v1168 = vmul.f32 %v1157, %v1165
        %v1169 = vmul.f32 %v1158, %v1165
        %v1170 = vmul.f32 %v1159, %v1165
        %v1171 = vadd.f32 %v1120, %v1166
        %v1172 = vadd.f32 %v1121, %v1167
        %v1173 = vadd.f32 %v1122, %v1168
        %v1174 = vadd.f32 %v1123, %v1169
        %v1175 = vadd.f32 %v1124, %v1170
        %v1176 = vld [vmem:[%s1160 + $0x1] sm:$0x1]
        %v1177 = vlaneseq
        %v1178 = vshrl.u32 %v1177, 7
        %v1179 = vsub.s32 0, %v1178
        %v1180 = vrot.slane %v1176, %v1179
        %v1181 = vmul.f32 %v1155, %v1180
        %v1182 = vmul.f32 %v1156, %v1180
        %v1183 = vmul.f32 %v1157, %v1180
        %v1184 = vmul.f32 %v1158, %v1180
        %v1185 = vmul.f32 %v1159, %v1180
        %v1186 = vadd.f32 %v1135, %v1181
        %v1187 = vadd.f32 %v1136, %v1182
        %v1188 = vadd.f32 %v1137, %v1183
        %v1189 = vadd.f32 %v1138, %v1184
        %v1190 = vadd.f32 %v1139, %v1185
        %v1191 = vld [vmem:[%s1160 + $0x2] sm:$0x1]
        %v1192 = vlaneseq
        %v1193 = vshrl.u32 %v1192, 7
        %v1194 = vsub.s32 0, %v1193
        %v1195 = vrot.slane %v1191, %v1194
        %v1196 = vmul.f32 %v1155, %v1195
        %v1197 = vmul.f32 %v1156, %v1195
        %v1198 = vmul.f32 %v1157, %v1195
        %v1199 = vmul.f32 %v1158, %v1195
        %v1200 = vmul.f32 %v1159, %v1195
        %v1201 = vadd.f32 %v1150, %v1196
        %v1202 = vadd.f32 %v1151, %v1197
        %v1203 = vadd.f32 %v1152, %v1198
        %v1204 = vadd.f32 %v1153, %v1199
        %v1205 = vadd.f32 %v1154, %v1200
        %v1206 = vld [vmem:[%s554 + $0x1] sm:$0x1f]
        %v1207 = vld [vmem:[%s554 + $0x9] sm:$0x1f]
        %v1208 = vld [vmem:[%s554 + $0x11] sm:$0x1f]
        %v1209 = vld [vmem:[%s554 + $0x19] sm:$0x1f]
        %v1210 = vld [vmem:[%s554 + $0x21] sm:$0x1f]
        %s1211 = scalar_lea.vmem %s2, 44
        %v1212 = vld [vmem:[%s1211] sm:$0x1]
        %v1213 = vlaneseq
        %v1214 = vshrl.u32 %v1213, 7
        %v1215 = vsub.s32 0, %v1214
        %v1216 = vrot.slane %v1212, %v1215
        %v1217 = vmul.f32 %v1206, %v1216
        %v1218 = vmul.f32 %v1207, %v1216
        %v1219 = vmul.f32 %v1208, %v1216
        %v1220 = vmul.f32 %v1209, %v1216
        %v1221 = vmul.f32 %v1210, %v1216
        %v1222 = vadd.f32 %v1171, %v1217
        %v1223 = vadd.f32 %v1172, %v1218
        %v1224 = vadd.f32 %v1173, %v1219
        %v1225 = vadd.f32 %v1174, %v1220
        %v1226 = vadd.f32 %v1175, %v1221
        %v1227 = vld [vmem:[%s1211 + $0x1] sm:$0x1]
        %v1228 = vlaneseq
        %v1229 = vshrl.u32 %v1228, 7
        %v1230 = vsub.s32 0, %v1229
        %v1231 = vrot.slane %v1227, %v1230
        %v1232 = vmul.f32 %v1206, %v1231
        %v1233 = vmul.f32 %v1207, %v1231
        %v1234 = vmul.f32 %v1208, %v1231
        %v1235 = vmul.f32 %v1209, %v1231
        %v1236 = vmul.f32 %v1210, %v1231
        %v1237 = vadd.f32 %v1186, %v1232
        %v1238 = vadd.f32 %v1187, %v1233
        %v1239 = vadd.f32 %v1188, %v1234
        %v1240 = vadd.f32 %v1189, %v1235
        %v1241 = vadd.f32 %v1190, %v1236
        %v1242 = vld [vmem:[%s1211 + $0x2] sm:$0x1]
        %v1243 = vlaneseq
        %v1244 = vshrl.u32 %v1243, 7
        %v1245 = vsub.s32 0, %v1244
        %v1246 = vrot.slane %v1242, %v1245
        %v1247 = vmul.f32 %v1206, %v1246
        %v1248 = vmul.f32 %v1207, %v1246
        %v1249 = vmul.f32 %v1208, %v1246
        %v1250 = vmul.f32 %v1209, %v1246
        %v1251 = vmul.f32 %v1210, %v1246
        %v1252 = vadd.f32 %v1201, %v1247
        %v1253 = vadd.f32 %v1202, %v1248
        %v1254 = vadd.f32 %v1203, %v1249
        %v1255 = vadd.f32 %v1204, %v1250
        %v1256 = vadd.f32 %v1205, %v1251
        %v1257 = vld [vmem:[%s559] sm:$0x1f]
        %v1258 = vld [vmem:[%s559 + $0x8] sm:$0x1f]
        %v1259 = vld [vmem:[%s559 + $0x10] sm:$0x1f]
        %v1260 = vld [vmem:[%s559 + $0x18] sm:$0x1f]
        %v1261 = vld [vmem:[%s559 + $0x20] sm:$0x1f]
        %s1262 = scalar_lea.vmem %s2, 48
        %v1263 = vld [vmem:[%s1262] sm:$0x1]
        %v1264 = vlaneseq
        %v1265 = vshrl.u32 %v1264, 7
        %v1266 = vsub.s32 0, %v1265
        %v1267 = vrot.slane %v1263, %v1266
        %v1268 = vmul.f32 %v1257, %v1267
        %v1269 = vmul.f32 %v1258, %v1267
        %v1270 = vmul.f32 %v1259, %v1267
        %v1271 = vmul.f32 %v1260, %v1267
        %v1272 = vmul.f32 %v1261, %v1267
        %v1273 = vadd.f32 %v1222, %v1268
        %v1274 = vadd.f32 %v1223, %v1269
        %v1275 = vadd.f32 %v1224, %v1270
        %v1276 = vadd.f32 %v1225, %v1271
        %v1277 = vadd.f32 %v1226, %v1272
        %v1278 = vld [vmem:[%s1262 + $0x1] sm:$0x1]
        %v1279 = vlaneseq
        %v1280 = vshrl.u32 %v1279, 7
        %v1281 = vsub.s32 0, %v1280
        %v1282 = vrot.slane %v1278, %v1281
        %v1283 = vmul.f32 %v1257, %v1282
        %v1284 = vmul.f32 %v1258, %v1282
        %v1285 = vmul.f32 %v1259, %v1282
        %v1286 = vmul.f32 %v1260, %v1282
        %v1287 = vmul.f32 %v1261, %v1282
        %v1288 = vadd.f32 %v1237, %v1283
        %v1289 = vadd.f32 %v1238, %v1284
        %v1290 = vadd.f32 %v1239, %v1285
        %v1291 = vadd.f32 %v1240, %v1286
        %v1292 = vadd.f32 %v1241, %v1287
        %v1293 = vld [vmem:[%s1262 + $0x2] sm:$0x1]
        %v1294 = vlaneseq
        %v1295 = vshrl.u32 %v1294, 7
        %v1296 = vsub.s32 0, %v1295
        %v1297 = vrot.slane %v1293, %v1296
        %v1298 = vmul.f32 %v1257, %v1297
        %v1299 = vmul.f32 %v1258, %v1297
        %v1300 = vmul.f32 %v1259, %v1297
        %v1301 = vmul.f32 %v1260, %v1297
        %v1302 = vmul.f32 %v1261, %v1297
        %v1303 = vadd.f32 %v1252, %v1298
        %v1304 = vadd.f32 %v1253, %v1299
        %v1305 = vadd.f32 %v1254, %v1300
        %v1306 = vadd.f32 %v1255, %v1301
        %v1307 = vadd.f32 %v1256, %v1302
        %v1308 = vld [vmem:[%s566] sm:$0x1f]
        %v1309 = vld [vmem:[%s566 + $0x8] sm:$0x1f]
        %v1310 = vld [vmem:[%s566 + $0x10] sm:$0x1f]
        %v1311 = vld [vmem:[%s566 + $0x18] sm:$0x1f]
        %v1312 = vld [vmem:[%s566 + $0x20] sm:$0x1f]
        %s1313 = scalar_lea.vmem %s2, 52
        %v1314 = vld [vmem:[%s1313] sm:$0x1]
        %v1315 = vlaneseq
        %v1316 = vshrl.u32 %v1315, 7
        %v1317 = vsub.s32 0, %v1316
        %v1318 = vrot.slane %v1314, %v1317
        %v1319 = vmul.f32 %v1308, %v1318
        %v1320 = vmul.f32 %v1309, %v1318
        %v1321 = vmul.f32 %v1310, %v1318
        %v1322 = vmul.f32 %v1311, %v1318
        %v1323 = vmul.f32 %v1312, %v1318
        %v1324 = vadd.f32 %v1273, %v1319
        %v1325 = vadd.f32 %v1274, %v1320
        %v1326 = vadd.f32 %v1275, %v1321
        %v1327 = vadd.f32 %v1276, %v1322
        %v1328 = vadd.f32 %v1277, %v1323
        %v1329 = vld [vmem:[%s1313 + $0x1] sm:$0x1]
        %v1330 = vlaneseq
        %v1331 = vshrl.u32 %v1330, 7
        %v1332 = vsub.s32 0, %v1331
        %v1333 = vrot.slane %v1329, %v1332
        %v1334 = vmul.f32 %v1308, %v1333
        %v1335 = vmul.f32 %v1309, %v1333
        %v1336 = vmul.f32 %v1310, %v1333
        %v1337 = vmul.f32 %v1311, %v1333
        %v1338 = vmul.f32 %v1312, %v1333
        %v1339 = vadd.f32 %v1288, %v1334
        %v1340 = vadd.f32 %v1289, %v1335
        %v1341 = vadd.f32 %v1290, %v1336
        %v1342 = vadd.f32 %v1291, %v1337
        %v1343 = vadd.f32 %v1292, %v1338
        %v1344 = vld [vmem:[%s1313 + $0x2] sm:$0x1]
        %v1345 = vlaneseq
        %v1346 = vshrl.u32 %v1345, 7
        %v1347 = vsub.s32 0, %v1346
        %v1348 = vrot.slane %v1344, %v1347
        %v1349 = vmul.f32 %v1308, %v1348
        %v1350 = vmul.f32 %v1309, %v1348
        %v1351 = vmul.f32 %v1310, %v1348
        %v1352 = vmul.f32 %v1311, %v1348
        %v1353 = vmul.f32 %v1312, %v1348
        %v1354 = vadd.f32 %v1303, %v1349
        %v1355 = vadd.f32 %v1304, %v1350
        %v1356 = vadd.f32 %v1305, %v1351
        %v1357 = vadd.f32 %v1306, %v1352
        %v1358 = vadd.f32 %v1307, %v1353
        %v1359 = vld [vmem:[%s559 + $0x1] sm:$0x1f]
        %v1360 = vld [vmem:[%s559 + $0x9] sm:$0x1f]
        %v1361 = vld [vmem:[%s559 + $0x11] sm:$0x1f]
        %v1362 = vld [vmem:[%s559 + $0x19] sm:$0x1f]
        %v1363 = vld [vmem:[%s559 + $0x21] sm:$0x1f]
        %s1364 = scalar_lea.vmem %s2, 56
        %v1365 = vld [vmem:[%s1364] sm:$0x1]
        %v1366 = vlaneseq
        %v1367 = vshrl.u32 %v1366, 7
        %v1368 = vsub.s32 0, %v1367
        %v1369 = vrot.slane %v1365, %v1368
        %v1370 = vmul.f32 %v1359, %v1369
        %v1371 = vmul.f32 %v1360, %v1369
        %v1372 = vmul.f32 %v1361, %v1369
        %v1373 = vmul.f32 %v1362, %v1369
        %v1374 = vmul.f32 %v1363, %v1369
        %v1375 = vadd.f32 %v1324, %v1370
        %v1376 = vadd.f32 %v1325, %v1371
        %v1377 = vadd.f32 %v1326, %v1372
        %v1378 = vadd.f32 %v1327, %v1373
        %v1379 = vadd.f32 %v1328, %v1374
        %v1380 = vld [vmem:[%s1364 + $0x1] sm:$0x1]
        %v1381 = vlaneseq
        %v1382 = vshrl.u32 %v1381, 7
        %v1383 = vsub.s32 0, %v1382
        %v1384 = vrot.slane %v1380, %v1383
        %v1385 = vmul.f32 %v1359, %v1384
        %v1386 = vmul.f32 %v1360, %v1384
        %v1387 = vmul.f32 %v1361, %v1384
        %v1388 = vmul.f32 %v1362, %v1384
        %v1389 = vmul.f32 %v1363, %v1384
        %v1390 = vadd.f32 %v1339, %v1385
        %v1391 = vadd.f32 %v1340, %v1386
        %v1392 = vadd.f32 %v1341, %v1387
        %v1393 = vadd.f32 %v1342, %v1388
        %v1394 = vadd.f32 %v1343, %v1389
        %v1395 = vld [vmem:[%s1364 + $0x2] sm:$0x1]
        %v1396 = vlaneseq
        %v1397 = vshrl.u32 %v1396, 7
        %v1398 = vsub.s32 0, %v1397
        %v1399 = vrot.slane %v1395, %v1398
        %v1400 = vmul.f32 %v1359, %v1399
        %v1401 = vmul.f32 %v1360, %v1399
        %v1402 = vmul.f32 %v1361, %v1399
        %v1403 = vmul.f32 %v1362, %v1399
        %v1404 = vmul.f32 %v1363, %v1399
        %v1405 = vadd.f32 %v1354, %v1400
        %v1406 = vadd.f32 %v1355, %v1401
        %v1407 = vadd.f32 %v1356, %v1402
        %v1408 = vadd.f32 %v1357, %v1403
        %v1409 = vadd.f32 %v1358, %v1404
        %v1410 = vld [vmem:[%s566 + $0x1] sm:$0x1f]
        %v1411 = vld [vmem:[%s566 + $0x9] sm:$0x1f]
        %v1412 = vld [vmem:[%s566 + $0x11] sm:$0x1f]
        %v1413 = vld [vmem:[%s566 + $0x19] sm:$0x1f]
        %v1414 = vld [vmem:[%s566 + $0x21] sm:$0x1f]
        %s1415 = scalar_lea.vmem %s2, 60
        %v1416 = vld [vmem:[%s1415] sm:$0x1]
        %v1417 = vlaneseq
        %v1418 = vshrl.u32 %v1417, 7
        %v1419 = vsub.s32 0, %v1418
        %v1420 = vrot.slane %v1416, %v1419
        %v1421 = vmul.f32 %v1410, %v1420
        %v1422 = vmul.f32 %v1411, %v1420
        %v1423 = vmul.f32 %v1412, %v1420
        %v1424 = vmul.f32 %v1413, %v1420
        %v1425 = vmul.f32 %v1414, %v1420
        %v1426 = vadd.f32 %v1375, %v1421
        %v1427 = vadd.f32 %v1376, %v1422
        %v1428 = vadd.f32 %v1377, %v1423
        %v1429 = vadd.f32 %v1378, %v1424
        %v1430 = vadd.f32 %v1379, %v1425
        %v1431 = vld [vmem:[%s1415 + $0x1] sm:$0x1]
        %v1432 = vlaneseq
        %v1433 = vshrl.u32 %v1432, 7
        %v1434 = vsub.s32 0, %v1433
        %v1435 = vrot.slane %v1431, %v1434
        %v1436 = vmul.f32 %v1410, %v1435
        %v1437 = vmul.f32 %v1411, %v1435
        %v1438 = vmul.f32 %v1412, %v1435
        %v1439 = vmul.f32 %v1413, %v1435
        %v1440 = vmul.f32 %v1414, %v1435
        %v1441 = vadd.f32 %v1390, %v1436
        %v1442 = vadd.f32 %v1391, %v1437
        %v1443 = vadd.f32 %v1392, %v1438
        %v1444 = vadd.f32 %v1393, %v1439
        %v1445 = vadd.f32 %v1394, %v1440
        %v1446 = vld [vmem:[%s1415 + $0x2] sm:$0x1]
        %v1447 = vlaneseq
        %v1448 = vshrl.u32 %v1447, 7
        %v1449 = vsub.s32 0, %v1448
        %v1450 = vrot.slane %v1446, %v1449
        %v1451 = vmul.f32 %v1410, %v1450
        %v1452 = vmul.f32 %v1411, %v1450
        %v1453 = vmul.f32 %v1412, %v1450
        %v1454 = vmul.f32 %v1413, %v1450
        %v1455 = vmul.f32 %v1414, %v1450
        %v1456 = vadd.f32 %v1405, %v1451
        %v1457 = vadd.f32 %v1406, %v1452
        %v1458 = vadd.f32 %v1407, %v1453
        %v1459 = vadd.f32 %v1408, %v1454
        %v1460 = vadd.f32 %v1409, %v1455
        %v1461 = vsel %vm548, %v1426, 0.0
        %1462 = vadd.xlane.f32.xlu0 %v1461
        %v1463 = vpop.xlane.xlu0 %1462
        %v1464 = vsel %vm548, %v1427, 0.0
        %1465 = vadd.xlane.f32.xlu0 %v1464
        %v1466 = vpop.xlane.xlu0 %1465
        %v1467 = vsel %vm548, %v1428, 0.0
        %1468 = vadd.xlane.f32.xlu0 %v1467
        %v1469 = vpop.xlane.xlu0 %1468
        %v1470 = vsel %vm548, %v1429, 0.0
        %1471 = vadd.xlane.f32.xlu0 %v1470
        %v1472 = vpop.xlane.xlu0 %1471
        %v1473 = vsel %vm548, %v1430, 0.0
        %1474 = vadd.xlane.f32.xlu0 %v1473
        %v1475 = vpop.xlane.xlu0 %1474
        %s1476 = sld [smem:[#allocation3]]
        %v1477 = vstv %s1476
        %v1478 = vadd.f32 %v1463, %v1477
        %v1479 = vadd.f32 %v1466, %v1477
        %v1480 = vadd.f32 %v1469, %v1477
        %v1481 = vadd.f32 %v1472, %v1477
        %v1482 = vadd.f32 %v1475, %v1477
        %v1488 = vlaneseq
        %v1489 = vand.u32 %v1488, 127
        %v1490 = vlaneseq
        %v1491 = vshrl.u32 %v1490, 7
        %v1492 = vsub.s32 %v1489, %v1491
        %v1493 = vrot.slane %v1478, %v1492
        %v1494 = vlaneseq
        %v1495 = vshrl.u32 %v1494, 7
        %v1496 = vsub.s32 %v1489, %v1495
        %v1497 = vrot.slane %v1479, %v1496
        %v1498 = vlaneseq
        %v1499 = vshrl.u32 %v1498, 7
        %v1500 = vsub.s32 %v1489, %v1499
        %v1501 = vrot.slane %v1480, %v1500
        %v1502 = vlaneseq
        %v1503 = vshrl.u32 %v1502, 7
        %v1504 = vsub.s32 %v1489, %v1503
        %v1505 = vrot.slane %v1481, %v1504
        %v1506 = vlaneseq
        %v1507 = vshrl.u32 %v1506, 7
        %v1508 = vsub.s32 %v1489, %v1507
        %v1509 = vrot.slane %v1482, %v1508
        %vm1510 = vcmask 1041409
        %v1511 = vsel %vm1510, %v1497, %v1493
        %vm1512 = vcmask 1042434
        %v1513 = vsel %vm1512, %v1501, %v1511
        %vm1514 = vcmask 1043459
        %v1515 = vsel %vm1514, %v1505, %v1513
        %vm1516 = vcmask 1044484
        %v1517 = vsel %vm1516, %v1509, %v1515
        %vm1519 = vcmask 36864
        %1520 = vst.msk [vmem:[%s211] sm:$0x1f] %vm1519, %v1517
        %v1521 = vsel %vm548, %v1441, 0.0
        %1522 = vadd.xlane.f32.xlu0 %v1521
        %v1523 = vpop.xlane.xlu0 %1522
        %v1524 = vsel %vm548, %v1442, 0.0
        %1525 = vadd.xlane.f32.xlu0 %v1524
        %v1526 = vpop.xlane.xlu0 %1525
        %v1527 = vsel %vm548, %v1443, 0.0
        %1528 = vadd.xlane.f32.xlu0 %v1527
        %v1529 = vpop.xlane.xlu0 %1528
        %v1530 = vsel %vm548, %v1444, 0.0
        %1531 = vadd.xlane.f32.xlu0 %v1530
        %v1532 = vpop.xlane.xlu0 %1531
        %v1533 = vsel %vm548, %v1445, 0.0
        %1534 = vadd.xlane.f32.xlu0 %v1533
        %v1535 = vpop.xlane.xlu0 %1534
        %s1536 = sld [smem:[#allocation3 + $0x1]]
        %v1537 = vstv %s1536
        %v1538 = vadd.f32 %v1523, %v1537
        %v1539 = vadd.f32 %v1526, %v1537
        %v1540 = vadd.f32 %v1529, %v1537
        %v1541 = vadd.f32 %v1532, %v1537
        %v1542 = vadd.f32 %v1535, %v1537
        %v1548 = vlaneseq
        %v1549 = vshrl.u32 %v1548, 7
        %v1550 = vsub.s32 %v1489, %v1549
        %v1551 = vrot.slane %v1538, %v1550
        %v1552 = vlaneseq
        %v1553 = vshrl.u32 %v1552, 7
        %v1554 = vsub.s32 %v1489, %v1553
        %v1555 = vrot.slane %v1539, %v1554
        %v1556 = vlaneseq
        %v1557 = vshrl.u32 %v1556, 7
        %v1558 = vsub.s32 %v1489, %v1557
        %v1559 = vrot.slane %v1540, %v1558
        %v1560 = vlaneseq
        %v1561 = vshrl.u32 %v1560, 7
        %v1562 = vsub.s32 %v1489, %v1561
        %v1563 = vrot.slane %v1541, %v1562
        %v1564 = vlaneseq
        %v1565 = vshrl.u32 %v1564, 7
        %v1566 = vsub.s32 %v1489, %v1565
        %v1567 = vrot.slane %v1542, %v1566
        %v1568 = vsel %vm1510, %v1555, %v1551
        %v1569 = vsel %vm1512, %v1559, %v1568
        %v1570 = vsel %vm1514, %v1563, %v1569
        %v1571 = vsel %vm1516, %v1567, %v1570
        %s1573 = scalar_lea.vmem %s211, 8
        %1574 = vst.msk [vmem:[%s1573] sm:$0x1f] %vm1519, %v1571
        %v1575 = vsel %vm548, %v1456, 0.0
        %1576 = vadd.xlane.f32.xlu0 %v1575
        %v1577 = vpop.xlane.xlu0 %1576
        %v1578 = vsel %vm548, %v1457, 0.0
        %1579 = vadd.xlane.f32.xlu0 %v1578
        %v1580 = vpop.xlane.xlu0 %1579
        %v1581 = vsel %vm548, %v1458, 0.0
        %1582 = vadd.xlane.f32.xlu0 %v1581
        %v1583 = vpop.xlane.xlu0 %1582
        %v1584 = vsel %vm548, %v1459, 0.0
        %1585 = vadd.xlane.f32.xlu0 %v1584
        %v1586 = vpop.xlane.xlu0 %1585
        %v1587 = vsel %vm548, %v1460, 0.0
        %1588 = vadd.xlane.f32.xlu0 %v1587
        %v1589 = vpop.xlane.xlu0 %1588
        %s1590 = sld [smem:[#allocation3 + $0x2]]
        %v1591 = vstv %s1590
        %v1592 = vadd.f32 %v1577, %v1591
        %v1593 = vadd.f32 %v1580, %v1591
        %v1594 = vadd.f32 %v1583, %v1591
        %v1595 = vadd.f32 %v1586, %v1591
        %v1596 = vadd.f32 %v1589, %v1591
        %v1602 = vlaneseq
        %v1603 = vshrl.u32 %v1602, 7
        %v1604 = vsub.s32 %v1489, %v1603
        %v1605 = vrot.slane %v1592, %v1604
        %v1606 = vlaneseq
        %v1607 = vshrl.u32 %v1606, 7
        %v1608 = vsub.s32 %v1489, %v1607
        %v1609 = vrot.slane %v1593, %v1608
        %v1610 = vlaneseq
        %v1611 = vshrl.u32 %v1610, 7
        %v1612 = vsub.s32 %v1489, %v1611
        %v1613 = vrot.slane %v1594, %v1612
        %v1614 = vlaneseq
        %v1615 = vshrl.u32 %v1614, 7
        %v1616 = vsub.s32 %v1489, %v1615
        %v1617 = vrot.slane %v1595, %v1616
        %v1618 = vlaneseq
        %v1619 = vshrl.u32 %v1618, 7
        %v1620 = vsub.s32 %v1489, %v1619
        %v1621 = vrot.slane %v1596, %v1620
        %v1622 = vsel %vm1510, %v1609, %v1605
        %v1623 = vsel %vm1512, %v1613, %v1622
        %v1624 = vsel %vm1514, %v1617, %v1623
        %v1625 = vsel %vm1516, %v1621, %v1624
        %s1627 = scalar_lea.vmem %s211, 16
        %1628 = vst.msk [vmem:[%s1627] sm:$0x1f] %vm1519, %v1625
        %p1629 = scmp.lt.s32.totalorder %s16, 1
        %s1630 = scalar_select %p1629, %s16, 1
        %s1631 = smul.addr %s1630, 3
        %s1632 = smul.addr %s1631, 8
        %s1633 = scalar_lea.vmem %s4, %s1632
        // Predicated region
        $region41: #{poly_generator_c3.1} parent=35 // pred_check
          %p1634 = pneg %p123
        $region42: #{poly_generator_c3.1} parent=35 // pred_check_branch
          %1636 = sbr.rel (%p1634) target = $region44
        $region43: #{poly_generator_c3.1} parent=35 // pred_region
          _
        $region44: #{poly_generator_c3.1} parent=35 // pred_fallthru
          _
      $region36: #{poly_generator_c3.1} parent=5 // pred_fallthru
        _
      %p1637 = scmp.le.s32.totalorder 2, %s11
      // Predicated region
      $region45: #{poly_generator_c3.1} parent=5 // pred_check
        %p1638 = pneg %p1637
      $region46: #{poly_generator_c3.1} parent=5 // pred_check_branch
        %1640 = sbr.rel (%p1638) target = $region48
      $region47: #{poly_generator_c3.1} parent=5 // pred_region
        %s1641 = ssub.s32 %s11, 2
        // Predicated region
        $region49: #{poly_generator_c3.1} parent=47 // pred_check
          %p1642 = pneg %p129
        $region50: #{poly_generator_c3.1} parent=47 // pred_check_branch
          %1644 = sbr.rel (%p1642) target = $region52
        $region51: #{poly_generator_c3.1} parent=47 // pred_region
          %p1645 = scmp.lt.s32.totalorder %s17, 1
          %s1646 = scalar_select %p1645, %s17, 1
          %s1647 = smul.addr %s1646, 3
          %s1648 = smul.addr %s1647, 8
          %s1649 = scalar_lea.vmem %s4, %s1648
        $region52: #{poly_generator_c3.1} parent=47 // pred_fallthru
          _
      $region48: #{poly_generator_c3.1} parent=5 // pred_fallthru
        _
    $region6: #{poly_generator_c3.1} parent=1 // loop_footer
      %s15 = sadd.s32 1, %s11
    $region7: #{poly_generator_c3.1} parent=1 // loop_footer_branch
      %10 = sbr.rel target = $region3
    $region8: #{poly_generator_c3.1} parent=1 // loop_exit
      _
    %1650 = vsyncpa [#allocation4], 1
    %s1651 = scalar_lea.sflag [#allocation4], 1
    %1652 = vsyncpa %s1651, 1

</llo_original>
